<compile_context>
chip_gen: v6e
topology: v6e:2x2x1
jax: 0.10.0
libtpu: 0.0.40
codegen_flags: <defaults>
</compile_context>

<pallas_src>
import functools

import jax
import jax.numpy as jnp
import numpy as np
from jax.experimental import pallas as pl
from jax.experimental.pallas import tpu as pltpu

# Rows of M per MXU weight load.  256 saturates v6e/v7x (2x256 MXU); v5e only
# needs 128 — at these tile sizes either fits easily in scoped VMEM.
_TARGET_M_ROWS = 256


def _lr_local_features_kernel(H, x_ref, w1_ref, b1_ref, w2_ref, b2_ref, o_ref):
  # x_ref : (M, WC) f32   M = Nb*H rows (Nb images stacked), WC = W*C lanes
  # w*_ref: (3*WC, WC) bf16 banded im2row weights ; b*_ref: (1, WC) f32
  # o_ref : (M, WC) f32
  M, WC = x_ref.shape

  rows = jax.lax.broadcasted_iota(jnp.int32, (M, WC), 0)
  first_row = (rows % H) == 0          # y == 0   within its image
  last_row = (rows % H) == (H - 1)     # y == H-1 within its image

  def vert_taps(h):
    # h[y-1] / h[y+1] per image; roll uses the XLU, the masks implement the
    # y-direction "same" padding AND stop rows leaking across image borders.
    up = jnp.where(first_row, 0.0, pltpu.roll(h, 1, axis=0))
    dn = jnp.where(last_row, 0.0, pltpu.roll(h, M - 1, axis=0))
    return up, dn

  def conv3x3(h, w_ref, b_ref):
    up, dn = vert_taps(h)
    bf = jnp.bfloat16
    acc = jnp.dot(up.astype(bf), w_ref[0:WC, :],
                  preferred_element_type=jnp.float32)
    acc = acc + jnp.dot(h.astype(bf), w_ref[WC:2 * WC, :],
                        preferred_element_type=jnp.float32)
    acc = acc + jnp.dot(dn.astype(bf), w_ref[2 * WC:3 * WC, :],
                        preferred_element_type=jnp.float32)
    return acc + b_ref[...]

  x = x_ref[...]                                        # (M, WC) f32
  h = jnp.maximum(conv3x3(x, w1_ref, b1_ref), 0.0)      # conv1 + ReLU
  o_ref[...] = conv3x3(h, w2_ref, b2_ref).astype(o_ref.dtype)   # conv2


def _banded_weight(w_hwio, W):
  """(3, 3, Cin, Cout) HWIO conv weight -> (3*W*C, W*C) banded matmul weight.

  Row index = ky*W*C + x_src*C + ci ; column index = x_out*C + co, with
  entry w[ky, x_src - x_out + 1, ci, co] when |x_src - x_out| <= 1, else 0.
  The zero rows outside the band implement the x-direction "same" padding.
  """
  C = w_hwio.shape[2]
  x_src = np.arange(W)[:, None]
  x_out = np.arange(W)[None, :]
  kx = x_src - x_out + 1                      # (W, W)
  valid = jnp.asarray((kx >= 0) & (kx <= 2))
  kx_c = np.clip(kx, 0, 2)
  blocks = []
  for ky in range(3):
    g = w_hwio[ky][kx_c]                      # (W, W, C, C)
    g = jnp.where(valid[:, :, None, None], g, 0.0)
    g = g.transpose(0, 2, 1, 3).reshape(W * C, W * C)
    blocks.append(g)
  return jnp.concatenate(blocks, axis=0)      # (3*W*C, W*C)


def prepare_lr_local_features_params(w1, b1, w2, b2, W):
  """Weight preprocessing hoisted OUT of the per-forward path (run once).

  Returns bf16 banded weights and f32 lane-broadcast biases.
  """
  C = w1.shape[2]
  WC = W * C
  w1b = _banded_weight(w1, W).astype(jnp.bfloat16)      # (3*WC, WC)
  w2b = _banded_weight(w2, W).astype(jnp.bfloat16)
  b1f = jnp.tile(b1, W).reshape(1, WC).astype(jnp.float32)
  b2f = jnp.tile(b2, W).reshape(1, WC).astype(jnp.float32)
  return w1b, b1f, w2b, b2f


@jax.jit
def lr_local_features(x_nhwc, w1b, b1f, w2b, b2f):
  """x_nhwc: (N, H, W, C) f32; w*b: (3*W*C, W*C) bf16; b*f: (1, W*C) f32."""
  N, H, W, C = x_nhwc.shape
  WC = W * C

  # Batch Nb images into the matmul M dimension (M = Nb*H rows per step).
  Nb = min(N, max(1, -(-_TARGET_M_ROWS // H)))
  Ng = -(-N // Nb)                      # grid steps
  Npad = Ng * Nb
  M = Nb * H

  # Free layout plumbing: fold (W, C) -> W*C, fold (N, H) -> rows.
  xf = x_nhwc.astype(jnp.float32).reshape(N, H, WC)
  if Npad != N:
    xf = jnp.pad(xf, ((0, Npad - N), (0, 0), (0, 0)))
  xf = xf.reshape(Npad * H, WC)

  flops = 2 * (2 * (Npad * H) * (3 * WC) * WC)          # 2 convs, 2*M*K*N each
  bytes_accessed = (4 * 2 * Npad * H * WC               # x in + out
                    + 2 * 2 * 3 * WC * WC                # two bf16 weights
                    + 4 * 2 * WC)                        # two biases

  weight_spec = lambda: pl.BlockSpec((3 * WC, WC), lambda i: (0, 0),
                                     pipeline_mode=pl.Buffered(1))
  bias_spec = lambda: pl.BlockSpec((1, WC), lambda i: (0, 0),
                                   pipeline_mode=pl.Buffered(1))

  out = pl.pallas_call(
      functools.partial(_lr_local_features_kernel, H),
      out_shape=jax.ShapeDtypeStruct((Npad * H, WC), jnp.float32),
      grid=(Ng,),
      in_specs=[
          pl.BlockSpec((M, WC), lambda i: (i, 0)),
          weight_spec(), bias_spec(),
          weight_spec(), bias_spec(),
      ],
      out_specs=pl.BlockSpec((M, WC), lambda i: (i, 0)),
      compiler_params=pltpu.CompilerParams(
          dimension_semantics=("parallel",)),
      cost_estimate=pl.CostEstimate(
          flops=int(flops), transcendentals=0,
          bytes_accessed=int(bytes_accessed)),
  )(xf, w1b, b1f, w2b, b2f)

  return out.reshape(Npad, H, W, C)[:N]


def _reference(x_nhwc, w1, b1, w2, b2):
  """Pure-JAX reference (NHWC activations, HWIO weights), f32."""
  dn = jax.lax.conv_dimension_numbers(x_nhwc.shape, w1.shape,
                                      ("NHWC", "HWIO", "NHWC"))
  y = jax.lax.conv_general_dilated(x_nhwc, w1, (1, 1), "SAME",
                                   dimension_numbers=dn) + b1
  y = jnp.maximum(y, 0.0)
  y = jax.lax.conv_general_dilated(y, w2, (1, 1), "SAME",
                                   dimension_numbers=dn) + b2
  return y


if __name__ == "__main__":
  # Module hyperparameters -> channel count
  cm, sb, lb, lris, bn = 1, 8, 4, 64, False
  C = int(cm * 2 ** int(np.log2(lris / sb) - 1) * lb)  # = 16
  N, H, W = 2, 16, 16

  key = jax.random.PRNGKey(0)
  kx, k1, kb1, k2, kb2 = jax.random.split(key, 5)

  # NHWC activations; (kh, kw, Cin, Cout) weights (= torch w.transpose(2,3,1,0)).
  x = jax.random.normal(kx, (N, H, W, C), jnp.float32)
  w1 = jax.random.normal(k1, (3, 3, C, C), jnp.float32) * 0.1
  b1 = jax.random.normal(kb1, (C,), jnp.float32) * 0.1
  w2 = jax.random.normal(k2, (3, 3, C, C), jnp.float32) * 0.1
  b2 = jax.random.normal(kb2, (C,), jnp.float32) * 0.1

  # Weight preprocessing runs once (inference-style), not per forward pass.
  params = prepare_lr_local_features_params(w1, b1, w2, b2, W)
  params = jax.block_until_ready(params)

  out = lr_local_features(x, *params)
  out = jax.block_until_ready(out)

  ref = _reference(x, w1, b1, w2, b2)
  # bf16 weights / MXU operands (f32 accumulation) -> looser tolerance than f32.
  np.testing.assert_allclose(np.asarray(out), np.asarray(ref),
                             rtol=5e-2, atol=5e-2)
  print("KERNEL_OK")
</pallas_src>

<mosaic_0001>
module attributes {stable_mosaic.version = 11 : i64} {
  func.func @_lr_local_features_kernel(%arg0: i32, %arg1: memref<32x256xf32, #tpu.memory_space<vmem>>, %arg2: memref<768x256xbf16, #tpu.memory_space<vmem>>, %arg3: memref<1x256xf32, #tpu.memory_space<vmem>>, %arg4: memref<768x256xbf16, #tpu.memory_space<vmem>>, %arg5: memref<1x256xf32, #tpu.memory_space<vmem>>, %arg6: memref<32x256xf32, #tpu.memory_space<vmem>>) attributes {dimension_semantics = [#tpu.dimension_semantics<parallel>], iteration_bounds = array<i64: 1>, scalar_prefetch = 0 : i64, scratch_operands = 0 : i64, tpu.core_type = #tpu.core_type<tc>, window_params = [{transform_indices = @transform_0, window_bounds = array<i64: 32, 256>}, {pipeline_mode = #tpu.pipeline_mode<synchronous>, transform_indices = @transform_1, window_bounds = array<i64: 768, 256>}, {pipeline_mode = #tpu.pipeline_mode<synchronous>, transform_indices = @transform_2, window_bounds = array<i64: 1, 256>}, {pipeline_mode = #tpu.pipeline_mode<synchronous>, transform_indices = @transform_3, window_bounds = array<i64: 768, 256>}, {pipeline_mode = #tpu.pipeline_mode<synchronous>, transform_indices = @transform_4, window_bounds = array<i64: 1, 256>}, {transform_indices = @transform_5, window_bounds = array<i64: 32, 256>}]} {
    %0 = tpu.iota {dimensions = array<i32: 0>} : vector<32x256xi32>
    %c16_i32 = arith.constant 16 : i32
    %c0_i32 = arith.constant 0 : i32
    %1 = arith.cmpi eq, %c16_i32, %c0_i32 : i32
    %c1_i32 = arith.constant 1 : i32
    %2 = arith.select %1, %c1_i32, %c16_i32 : i32
    %3 = vector.broadcast %2 : i32 to vector<32x256xi32>
    %4 = arith.remsi %0, %3 : vector<32x256xi32>
    %c0_i32_0 = arith.constant 0 : i32
    %5 = vector.broadcast %c0_i32_0 : i32 to vector<32x256xi32>
    %6 = arith.cmpi ne, %4, %5 : vector<32x256xi32>
    %c0_i32_1 = arith.constant 0 : i32
    %7 = vector.broadcast %c0_i32_1 : i32 to vector<32x256xi32>
    %8 = arith.cmpi slt, %4, %7 : vector<32x256xi32>
    %c0_i32_2 = arith.constant 0 : i32
    %9 = arith.cmpi slt, %2, %c0_i32_2 : i32
    %10 = vector.broadcast %9 : i1 to vector<32x256xi1>
    %11 = vector.broadcast %10 : vector<32x256xi1> to vector<32x256xi1>
    %12 = arith.xori %8, %11 : vector<32x256xi1>
    %13 = arith.andi %12, %6 : vector<32x256xi1>
    %14 = vector.broadcast %2 : i32 to vector<32x256xi32>
    %15 = arith.addi %4, %14 : vector<32x256xi32>
    %16 = arith.select %13, %15, %4 : vector<32x256xi1>, vector<32x256xi32>
    %c0_i32_3 = arith.constant 0 : i32
    %17 = vector.broadcast %c0_i32_3 : i32 to vector<32x256xi32>
    %18 = arith.cmpi eq, %16, %17 : vector<32x256xi32>
    %c16_i32_4 = arith.constant 16 : i32
    %c0_i32_5 = arith.constant 0 : i32
    %19 = arith.cmpi eq, %c16_i32_4, %c0_i32_5 : i32
    %c1_i32_6 = arith.constant 1 : i32
    %20 = arith.select %19, %c1_i32_6, %c16_i32_4 : i32
    %21 = vector.broadcast %20 : i32 to vector<32x256xi32>
    %22 = arith.remsi %0, %21 : vector<32x256xi32>
    %c0_i32_7 = arith.constant 0 : i32
    %23 = vector.broadcast %c0_i32_7 : i32 to vector<32x256xi32>
    %24 = arith.cmpi ne, %22, %23 : vector<32x256xi32>
    %c0_i32_8 = arith.constant 0 : i32
    %25 = vector.broadcast %c0_i32_8 : i32 to vector<32x256xi32>
    %26 = arith.cmpi slt, %22, %25 : vector<32x256xi32>
    %c0_i32_9 = arith.constant 0 : i32
    %27 = arith.cmpi slt, %20, %c0_i32_9 : i32
    %28 = vector.broadcast %27 : i1 to vector<32x256xi1>
    %29 = vector.broadcast %28 : vector<32x256xi1> to vector<32x256xi1>
    %30 = arith.xori %26, %29 : vector<32x256xi1>
    %31 = arith.andi %30, %24 : vector<32x256xi1>
    %32 = vector.broadcast %20 : i32 to vector<32x256xi32>
    %33 = arith.addi %22, %32 : vector<32x256xi32>
    %34 = arith.select %31, %33, %22 : vector<32x256xi1>, vector<32x256xi32>
    %c15_i32 = arith.constant 15 : i32
    %35 = vector.broadcast %c15_i32 : i32 to vector<32x256xi32>
    %36 = arith.cmpi eq, %34, %35 : vector<32x256xi32>
    %c0 = arith.constant 0 : index
    %c0_10 = arith.constant 0 : index
    %37 = vector.load %arg1[%c0, %c0_10] : memref<32x256xf32, #tpu.memory_space<vmem>>, vector<32x256xf32>
    %c1_i32_11 = arith.constant 1 : i32
    %38 = tpu.dynamic_rotate %37 by %c1_i32_11 dim 0 : vector<32x256xf32>, i32 -> vector<32x256xf32>
    %cst = arith.constant 0.000000e+00 : f32
    %39 = vector.broadcast %cst : f32 to vector<32x256xf32>
    %40 = arith.select %18, %39, %38 : vector<32x256xi1>, vector<32x256xf32>
    %c31_i32 = arith.constant 31 : i32
    %41 = tpu.dynamic_rotate %37 by %c31_i32 dim 0 : vector<32x256xf32>, i32 -> vector<32x256xf32>
    %cst_12 = arith.constant 0.000000e+00 : f32
    %42 = vector.broadcast %cst_12 : f32 to vector<32x256xf32>
    %43 = arith.select %36, %42, %41 : vector<32x256xi1>, vector<32x256xf32>
    %44 = arith.truncf %40 : vector<32x256xf32> to vector<32x256xbf16>
    %c0_13 = arith.constant 0 : index
    %c0_14 = arith.constant 0 : index
    %45 = vector.load %arg2[%c0_13, %c0_14] : memref<768x256xbf16, #tpu.memory_space<vmem>>, vector<256x256xbf16>
    %cst_15 = arith.constant dense<0.000000e+00> : vector<32x256xf32>
    %46 = tpu.matmul %44, %45, %cst_15 {dimension_numbers = #tpu.dot_dimension_numbers<[1], [0], [0], [1], [0, 0, 1, 1], [], []>} : vector<32x256xbf16>, vector<256x256xbf16>, vector<32x256xf32> -> vector<32x256xf32>
    %47 = arith.truncf %37 : vector<32x256xf32> to vector<32x256xbf16>
    %c256 = arith.constant 256 : index
    %c0_16 = arith.constant 0 : index
    %48 = vector.load %arg2[%c256, %c0_16] : memref<768x256xbf16, #tpu.memory_space<vmem>>, vector<256x256xbf16>
    %cst_17 = arith.constant dense<0.000000e+00> : vector<32x256xf32>
    %49 = tpu.matmul %47, %48, %cst_17 {dimension_numbers = #tpu.dot_dimension_numbers<[1], [0], [0], [1], [0, 0, 1, 1], [], []>} : vector<32x256xbf16>, vector<256x256xbf16>, vector<32x256xf32> -> vector<32x256xf32>
    %50 = arith.addf %46, %49 : vector<32x256xf32>
    %51 = arith.truncf %43 : vector<32x256xf32> to vector<32x256xbf16>
    %c512 = arith.constant 512 : index
    %c0_18 = arith.constant 0 : index
    %52 = vector.load %arg2[%c512, %c0_18] : memref<768x256xbf16, #tpu.memory_space<vmem>>, vector<256x256xbf16>
    %cst_19 = arith.constant dense<0.000000e+00> : vector<32x256xf32>
    %53 = tpu.matmul %51, %52, %cst_19 {dimension_numbers = #tpu.dot_dimension_numbers<[1], [0], [0], [1], [0, 0, 1, 1], [], []>} : vector<32x256xbf16>, vector<256x256xbf16>, vector<32x256xf32> -> vector<32x256xf32>
    %54 = arith.addf %50, %53 : vector<32x256xf32>
    %c0_20 = arith.constant 0 : index
    %c0_21 = arith.constant 0 : index
    %55 = vector.load %arg3[%c0_20, %c0_21] : memref<1x256xf32, #tpu.memory_space<vmem>>, vector<1x256xf32>
    %56 = vector.broadcast %55 : vector<1x256xf32> to vector<32x256xf32>
    %57 = arith.addf %54, %56 : vector<32x256xf32>
    %cst_22 = arith.constant 0.000000e+00 : f32
    %58 = vector.broadcast %cst_22 : f32 to vector<32x256xf32>
    %59 = arith.maximumf %57, %58 : vector<32x256xf32>
    %c1_i32_23 = arith.constant 1 : i32
    %60 = tpu.dynamic_rotate %59 by %c1_i32_23 dim 0 : vector<32x256xf32>, i32 -> vector<32x256xf32>
    %cst_24 = arith.constant 0.000000e+00 : f32
    %61 = vector.broadcast %cst_24 : f32 to vector<32x256xf32>
    %62 = arith.select %18, %61, %60 : vector<32x256xi1>, vector<32x256xf32>
    %c31_i32_25 = arith.constant 31 : i32
    %63 = tpu.dynamic_rotate %59 by %c31_i32_25 dim 0 : vector<32x256xf32>, i32 -> vector<32x256xf32>
    %cst_26 = arith.constant 0.000000e+00 : f32
    %64 = vector.broadcast %cst_26 : f32 to vector<32x256xf32>
    %65 = arith.select %36, %64, %63 : vector<32x256xi1>, vector<32x256xf32>
    %66 = arith.truncf %62 : vector<32x256xf32> to vector<32x256xbf16>
    %c0_27 = arith.constant 0 : index
    %c0_28 = arith.constant 0 : index
    %67 = vector.load %arg4[%c0_27, %c0_28] : memref<768x256xbf16, #tpu.memory_space<vmem>>, vector<256x256xbf16>
    %cst_29 = arith.constant dense<0.000000e+00> : vector<32x256xf32>
    %68 = tpu.matmul %66, %67, %cst_29 {dimension_numbers = #tpu.dot_dimension_numbers<[1], [0], [0], [1], [0, 0, 1, 1], [], []>} : vector<32x256xbf16>, vector<256x256xbf16>, vector<32x256xf32> -> vector<32x256xf32>
    %69 = arith.truncf %59 : vector<32x256xf32> to vector<32x256xbf16>
    %c256_30 = arith.constant 256 : index
    %c0_31 = arith.constant 0 : index
    %70 = vector.load %arg4[%c256_30, %c0_31] : memref<768x256xbf16, #tpu.memory_space<vmem>>, vector<256x256xbf16>
    %cst_32 = arith.constant dense<0.000000e+00> : vector<32x256xf32>
    %71 = tpu.matmul %69, %70, %cst_32 {dimension_numbers = #tpu.dot_dimension_numbers<[1], [0], [0], [1], [0, 0, 1, 1], [], []>} : vector<32x256xbf16>, vector<256x256xbf16>, vector<32x256xf32> -> vector<32x256xf32>
    %72 = arith.addf %68, %71 : vector<32x256xf32>
    %73 = arith.truncf %65 : vector<32x256xf32> to vector<32x256xbf16>
    %c512_33 = arith.constant 512 : index
    %c0_34 = arith.constant 0 : index
    %74 = vector.load %arg4[%c512_33, %c0_34] : memref<768x256xbf16, #tpu.memory_space<vmem>>, vector<256x256xbf16>
    %cst_35 = arith.constant dense<0.000000e+00> : vector<32x256xf32>
    %75 = tpu.matmul %73, %74, %cst_35 {dimension_numbers = #tpu.dot_dimension_numbers<[1], [0], [0], [1], [0, 0, 1, 1], [], []>} : vector<32x256xbf16>, vector<256x256xbf16>, vector<32x256xf32> -> vector<32x256xf32>
    %76 = arith.addf %72, %75 : vector<32x256xf32>
    %c0_36 = arith.constant 0 : index
    %c0_37 = arith.constant 0 : index
    %77 = vector.load %arg5[%c0_36, %c0_37] : memref<1x256xf32, #tpu.memory_space<vmem>>, vector<1x256xf32>
    %78 = vector.broadcast %77 : vector<1x256xf32> to vector<32x256xf32>
    %79 = arith.addf %76, %78 : vector<32x256xf32>
    %c0_38 = arith.constant 0 : index
    %c0_39 = arith.constant 0 : index
    %80 = vector.load %arg6[%c0_38, %c0_39] : memref<32x256xf32, #tpu.memory_space<vmem>>, vector<32x256xf32>
    tpu.vector_store %arg6[%c0_38, %c0_39], %79 {strides = array<i32>} : memref<32x256xf32, #tpu.memory_space<vmem>>, vector<32x256xf32>,
    return
  }
  func.func @transform_0(%arg0: i32) -> (i32, i32) {
    %c0_i32 = arith.constant 0 : i32
    %c0_i32_0 = arith.constant 0 : i32
    return %arg0, %c0_i32 : i32, i32
  }
  func.func @transform_1(%arg0: i32) -> (i32, i32) {
    %c0_i32 = arith.constant 0 : i32
    %c0_i32_0 = arith.constant 0 : i32
    %c0_i32_1 = arith.constant 0 : i32
    return %c0_i32, %c0_i32_0 : i32, i32
  }
  func.func @transform_2(%arg0: i32) -> (i32, i32) {
    %c0_i32 = arith.constant 0 : i32
    %c0_i32_0 = arith.constant 0 : i32
    %c0_i32_1 = arith.constant 0 : i32
    return %c0_i32, %c0_i32_0 : i32, i32
  }
  func.func @transform_3(%arg0: i32) -> (i32, i32) {
    %c0_i32 = arith.constant 0 : i32
    %c0_i32_0 = arith.constant 0 : i32
    %c0_i32_1 = arith.constant 0 : i32
    return %c0_i32, %c0_i32_0 : i32, i32
  }
  func.func @transform_4(%arg0: i32) -> (i32, i32) {
    %c0_i32 = arith.constant 0 : i32
    %c0_i32_0 = arith.constant 0 : i32
    %c0_i32_1 = arith.constant 0 : i32
    return %c0_i32, %c0_i32_0 : i32, i32
  }
  func.func @transform_5(%arg0: i32) -> (i32, i32) {
    %c0_i32 = arith.constant 0 : i32
    %c0_i32_0 = arith.constant 0 : i32
    return %arg0, %c0_i32 : i32, i32
  }
}

</mosaic_0001>

<llo_original>
// kernel: lr_local_features.1
$region0: #{lr_local_features.1}
  #allocation0 [shape = 'u32[]', space=smem, size = 0x4, offset = 0x4, fixed_abs, tag = 'smem constant byte address 0x4 - core index']
  #allocation1 [shape = 'u32[144,128]{1,0:T(1,128)}', space=vmem, size = 0x12000, scoped, tag = 'internal scratch']
  %s0 = inlined_call_operand.vmem [shape: f32[32,256], index: 0, kind: input, shape index: {}]
  %s1 = inlined_call_operand.hbm [shape: bf16[768,256], index: 1, kind: input, shape index: {}]
  %s2 = inlined_call_operand.vmem [shape: f32[1,256], index: 2, kind: input, shape index: {}]
  %s3 = inlined_call_operand.hbm [shape: bf16[768,256], index: 3, kind: input, shape index: {}]
  %s4 = inlined_call_operand.vmem [shape: f32[1,256], index: 4, kind: input, shape index: {}]
  %s5 = inlined_call_operand.vmem [shape: f32[32,256], index: 5, kind: output, shape index: {}]
  %s6 = sld [smem:[#allocation0]]
  $region38: #{lr_local_features.1} parent=0
    _
  %s8 = ssub.s32 1, %s6
  %s9 = scalar_select 0, %s8, %s6
  $region1: #{lr_local_features.1} parent=0
    #allocation2 [shape = 'u8[393216]{0}', space=vmem, size = 0x60000, scoped, tag = 'input window, operand 1, single buffered']
    #allocation3 [shape = 's32[1]{0}', space=sflag, size = 0x4, scoped, tag = 'scoped memory for lr_local_features.1']
    #allocation4 [shape = 'u8[393216]{0}', space=vmem, size = 0x60000, scoped, tag = 'input window, operand 3, single buffered']
    #allocation5 [shape = 's32[1]{0}', space=sflag, size = 0x4, scoped, tag = 'scoped memory for lr_local_features.1']
    %10 = vsyncpa [#allocation3], 0
    %11 = vsyncpa [#allocation5], 0
    // Predicated region
    $region2: #{lr_local_features.1} parent=1 // pred_check
      _
    $region3: #{lr_local_features.1} parent=1 // pred_check_branch
      %13 = sbr.rel (0) target = $region5
    $region4: #{lr_local_features.1} parent=1 // pred_region
      _
    $region5: #{lr_local_features.1} parent=1 // pred_fallthru
      _
    // Predicated region
    $region6: #{lr_local_features.1} parent=1 // pred_check
      _
    $region7: #{lr_local_features.1} parent=1 // pred_check_branch
      %15 = sbr.rel (0) target = $region9
    $region8: #{lr_local_features.1} parent=1 // pred_region
      %s17 = ssub.s32 12288, 12288
      %18 = vsyncadd [#allocation3], %s17
      %s19 = sshll.u32 [#allocation2], 4
      %s20 = int_to_ptr.vmem [resolvable:$true] %s19
      %25 = dma.hbm_to_vmem [thread:$0]  %s1, 12288, %s20, [#allocation3], 128, 128, 8
    $region9: #{lr_local_features.1} parent=1 // pred_fallthru
      _
    // Predicated region
    $region10: #{lr_local_features.1} parent=1 // pred_check
      _
    $region11: #{lr_local_features.1} parent=1 // pred_check_branch
      %27 = sbr.rel (0) target = $region13
    $region12: #{lr_local_features.1} parent=1 // pred_region
      _
    $region13: #{lr_local_features.1} parent=1 // pred_fallthru
      _
    // Predicated region
    $region14: #{lr_local_features.1} parent=1 // pred_check
      _
    $region15: #{lr_local_features.1} parent=1 // pred_check_branch
      %29 = sbr.rel (0) target = $region17
    $region16: #{lr_local_features.1} parent=1 // pred_region
      %s31 = ssub.s32 12288, 12288
      %32 = vsyncadd [#allocation5], %s31
      %s33 = sshll.u32 [#allocation4], 4
      %s34 = int_to_ptr.vmem [resolvable:$true] %s33
      %39 = dma.hbm_to_vmem [thread:$0]  %s3, 12288, %s34, [#allocation5], 128, 128, 8
    $region17: #{lr_local_features.1} parent=1 // pred_fallthru
      _
    // Predicated region
    $region18: #{lr_local_features.1} parent=1 // pred_check
      _
    $region19: #{lr_local_features.1} parent=1 // pred_check_branch
      %41 = sbr.rel (0) target = $region21
    $region20: #{lr_local_features.1} parent=1 // pred_region
      _
    $region21: #{lr_local_features.1} parent=1 // pred_fallthru
      _
    // Predicated region
    $region22: #{lr_local_features.1} parent=1 // pred_check
      _
    $region23: #{lr_local_features.1} parent=1 // pred_check_branch
      %43 = sbr.rel (0) target = $region25
    $region24: #{lr_local_features.1} parent=1 // pred_region
      %44 = dma.done [#allocation3], 12288
    $region25: #{lr_local_features.1} parent=1 // pred_fallthru
      _
    // Predicated region
    $region26: #{lr_local_features.1} parent=1 // pred_check
      _
    $region27: #{lr_local_features.1} parent=1 // pred_check_branch
      %46 = sbr.rel (0) target = $region29
    $region28: #{lr_local_features.1} parent=1 // pred_region
      %47 = dma.done [#allocation5], 12288
    $region29: #{lr_local_features.1} parent=1 // pred_fallthru
      _
    %v48 = vlaneseq
    %v49 = vshrl.u32 %v48, 7
    %v50 = vadd.s32 %v49, 8
    %v51 = vadd.s32 %v49, 16
    %v52 = vadd.s32 %v49, 24
    %vm53 = vcmp.lt.s32.totalorder %v49, 0
    %v54 = vsub.s32 0, %v49
    %v55 = vsel %vm53, %v54, %v49
    %v56 = vshrl.u32 %v55, 4
    %v57 = vand.u32 %v55, 15
    %v58 = vsub.s32 0, %v57
    %v59 = vsel %vm53, %v58, %v57
    %vm60 = vcmp.lt.s32.totalorder %v50, 0
    %v61 = vsub.s32 0, %v50
    %v62 = vsel %vm60, %v61, %v50
    %v63 = vshrl.u32 %v62, 4
    %v64 = vand.u32 %v62, 15
    %v65 = vsub.s32 0, %v64
    %v66 = vsel %vm60, %v65, %v64
    %vm67 = vcmp.lt.s32.totalorder %v51, 0
    %v68 = vsub.s32 0, %v51
    %v69 = vsel %vm67, %v68, %v51
    %v70 = vshrl.u32 %v69, 4
    %v71 = vand.u32 %v69, 15
    %v72 = vsub.s32 0, %v71
    %v73 = vsel %vm67, %v72, %v71
    %vm74 = vcmp.lt.s32.totalorder %v52, 0
    %v75 = vsub.s32 0, %v52
    %v76 = vsel %vm74, %v75, %v52
    %v77 = vshrl.u32 %v76, 4
    %v78 = vand.u32 %v76, 15
    %v79 = vsub.s32 0, %v78
    %v80 = vsel %vm74, %v79, %v78
    %vm81 = vcmp.ne.s32.totalorder %v59, 0
    %vm82 = vcmp.ne.s32.totalorder %v66, 0
    %vm83 = vcmp.ne.s32.totalorder %v73, 0
    %vm84 = vcmp.ne.s32.totalorder %v80, 0
    %vm85 = vcmp.lt.s32.totalorder %v59, 0
    %vm86 = vcmp.lt.s32.totalorder %v66, 0
    %vm87 = vcmp.lt.s32.totalorder %v73, 0
    %vm88 = vcmp.lt.s32.totalorder %v80, 0
    %vm89 = vmand %vm85, %vm81
    %vm90 = vmand %vm86, %vm82
    %vm91 = vmand %vm87, %vm83
    %vm92 = vmand %vm88, %vm84
    %v93 = vadd.s32 %v59, 16
    %v94 = vadd.s32 %v66, 16
    %v95 = vadd.s32 %v73, 16
    %v96 = vadd.s32 %v80, 16
    %v97 = vsel %vm89, %v93, %v59
    %v98 = vsel %vm90, %v94, %v66
    %v99 = vsel %vm91, %v95, %v73
    %v100 = vsel %vm92, %v96, %v80
    %vm101 = vcmp.eq.s32.totalorder %v97, 0
    %vm102 = vcmp.eq.s32.totalorder %v98, 0
    %vm103 = vcmp.eq.s32.totalorder %v99, 0
    %vm104 = vcmp.eq.s32.totalorder %v100, 0
    %vm105 = vcmp.eq.s32.totalorder %v97, 15
    %vm106 = vcmp.eq.s32.totalorder %v98, 15
    %vm107 = vcmp.eq.s32.totalorder %v99, 15
    %vm108 = vcmp.eq.s32.totalorder %v100, 15
    %v109 = vld [vmem:[%s0] sm:$0xff]
    %v110 = vld [vmem:[%s0 + $0x8] sm:$0xff]
    %v111 = vld [vmem:[%s0 + $0x10] sm:$0xff]
    %v112 = vld [vmem:[%s0 + $0x18] sm:$0xff]
    %v113 = vld [vmem:[%s0 + $0x20] sm:$0xff]
    %v114 = vld [vmem:[%s0 + $0x28] sm:$0xff]
    %v115 = vld [vmem:[%s0 + $0x30] sm:$0xff]
    %v116 = vld [vmem:[%s0 + $0x38] sm:$0xff]
    %v117 = vrot.slane %v109, 7
    %v118 = vrot.slane %v110, 7
    %v119 = vrot.slane %v111, 7
    %v120 = vrot.slane %v112, 7
    %v121 = vrot.slane %v113, 7
    %v122 = vrot.slane %v114, 7
    %v123 = vrot.slane %v115, 7
    %v124 = vrot.slane %v116, 7
    %vm125 = vcmp.lt.s32.totalorder %v49, 1
    %v126 = vsel %vm125, %v121, %v123
    %v127 = vsel %vm125, %v122, %v124
    %v128 = vsel %vm125, %v119, %v121
    %v129 = vsel %vm125, %v120, %v122
    %v130 = vsel %vm125, %v117, %v119
    %v131 = vsel %vm125, %v118, %v120
    %v132 = vsel %vm125, %v123, %v117
    %v133 = vsel %vm125, %v124, %v118
    %v134 = vsel %vm101, 0.0, %v132
    %v135 = vsel %vm101, 0.0, %v133
    %v136 = vsel %vm102, 0.0, %v130
    %v137 = vsel %vm102, 0.0, %v131
    %v138 = vsel %vm103, 0.0, %v128
    %v139 = vsel %vm103, 0.0, %v129
    %v140 = vsel %vm104, 0.0, %v126
    %v141 = vsel %vm104, 0.0, %v127
    %v142 = vrot.slane %v109, 1
    %v143 = vrot.slane %v110, 1
    %v144 = vrot.slane %v111, 1
    %v145 = vrot.slane %v112, 1
    %v146 = vrot.slane %v113, 1
    %v147 = vrot.slane %v114, 1
    %v148 = vrot.slane %v115, 1
    %v149 = vrot.slane %v116, 1
    %vm150 = vcmp.lt.s32.totalorder %v49, 7
    %v151 = vsel %vm150, %v146, %v148
    %v152 = vsel %vm150, %v147, %v149
    %v153 = vsel %vm150, %v144, %v146
    %v154 = vsel %vm150, %v145, %v147
    %v155 = vsel %vm150, %v142, %v144
    %v156 = vsel %vm150, %v143, %v145
    %v157 = vsel %vm150, %v148, %v142
    %v158 = vsel %vm150, %v149, %v143
    %v159 = vsel %vm105, 0.0, %v155
    %v160 = vsel %vm105, 0.0, %v156
    %v161 = vsel %vm106, 0.0, %v153
    %v162 = vsel %vm106, 0.0, %v154
    %v163 = vsel %vm107, 0.0, %v151
    %v164 = vsel %vm107, 0.0, %v152
    %v165 = vsel %vm108, 0.0, %v157
    %v166 = vsel %vm108, 0.0, %v158
    %v167 = vpack.c.bf16 %v136, %v134
    %v168 = vpack.c.bf16 %v137, %v135
    %v169 = vpack.c.bf16 %v140, %v138
    %v170 = vpack.c.bf16 %v141, %v139
    %v171 = vld [vmem:[#allocation2] sm:$0xff]
    %v172 = vld [vmem:[#allocation2 + $0x8] sm:$0xff]
    %v173 = vld [vmem:[#allocation2 + $0x10] sm:$0xff]
    %v174 = vld [vmem:[#allocation2 + $0x18] sm:$0xff]
    %v175 = vld [vmem:[#allocation2 + $0x20] sm:$0xff]
    %v176 = vld [vmem:[#allocation2 + $0x28] sm:$0xff]
    %v177 = vld [vmem:[#allocation2 + $0x30] sm:$0xff]
    %v178 = vld [vmem:[#allocation2 + $0x38] sm:$0xff]
    %v179 = vld [vmem:[#allocation2 + $0x40] sm:$0xff]
    %v180 = vld [vmem:[#allocation2 + $0x48] sm:$0xff]
    %v181 = vld [vmem:[#allocation2 + $0x50] sm:$0xff]
    %v182 = vld [vmem:[#allocation2 + $0x58] sm:$0xff]
    %v183 = vld [vmem:[#allocation2 + $0x60] sm:$0xff]
    %v184 = vld [vmem:[#allocation2 + $0x68] sm:$0xff]
    %v185 = vld [vmem:[#allocation2 + $0x70] sm:$0xff]
    %v186 = vld [vmem:[#allocation2 + $0x78] sm:$0xff]
    %v187 = vld [vmem:[#allocation2 + $0x80] sm:$0xff]
    %v188 = vld [vmem:[#allocation2 + $0x88] sm:$0xff]
    %v189 = vld [vmem:[#allocation2 + $0x90] sm:$0xff]
    %v190 = vld [vmem:[#allocation2 + $0x98] sm:$0xff]
    %v191 = vld [vmem:[#allocation2 + $0xa0] sm:$0xff]
    %v192 = vld [vmem:[#allocation2 + $0xa8] sm:$0xff]
    %v193 = vld [vmem:[#allocation2 + $0xb0] sm:$0xff]
    %v194 = vld [vmem:[#allocation2 + $0xb8] sm:$0xff]
    %v195 = vld [vmem:[#allocation2 + $0xc0] sm:$0xff]
    %v196 = vld [vmem:[#allocation2 + $0xc8] sm:$0xff]
    %v197 = vld [vmem:[#allocation2 + $0xd0] sm:$0xff]
    %v198 = vld [vmem:[#allocation2 + $0xd8] sm:$0xff]
    %v199 = vld [vmem:[#allocation2 + $0xe0] sm:$0xff]
    %v200 = vld [vmem:[#allocation2 + $0xe8] sm:$0xff]
    %v201 = vld [vmem:[#allocation2 + $0xf0] sm:$0xff]
    %v202 = vld [vmem:[#allocation2 + $0xf8] sm:$0xff]
    %v203 = vpack.c.bf16 %v111, %v109
    %v204 = vpack.c.bf16 %v112, %v110
    %v205 = vpack.c.bf16 %v115, %v113
    %v206 = vpack.c.bf16 %v116, %v114
    %v207 = vld [vmem:[#allocation2 + $0x100] sm:$0xff]
    %v208 = vld [vmem:[#allocation2 + $0x108] sm:$0xff]
    %v209 = vld [vmem:[#allocation2 + $0x110] sm:$0xff]
    %v210 = vld [vmem:[#allocation2 + $0x118] sm:$0xff]
    %v211 = vld [vmem:[#allocation2 + $0x120] sm:$0xff]
    %v212 = vld [vmem:[#allocation2 + $0x128] sm:$0xff]
    %v213 = vld [vmem:[#allocation2 + $0x130] sm:$0xff]
    %v214 = vld [vmem:[#allocation2 + $0x138] sm:$0xff]
    %v215 = vld [vmem:[#allocation2 + $0x140] sm:$0xff]
    %v216 = vld [vmem:[#allocation2 + $0x148] sm:$0xff]
    %v217 = vld [vmem:[#allocation2 + $0x150] sm:$0xff]
    %v218 = vld [vmem:[#allocation2 + $0x158] sm:$0xff]
    %v219 = vld [vmem:[#allocation2 + $0x160] sm:$0xff]
    %v220 = vld [vmem:[#allocation2 + $0x168] sm:$0xff]
    %v221 = vld [vmem:[#allocation2 + $0x170] sm:$0xff]
    %v222 = vld [vmem:[#allocation2 + $0x178] sm:$0xff]
    %v223 = vld [vmem:[#allocation2 + $0x180] sm:$0xff]
    %v224 = vld [vmem:[#allocation2 + $0x188] sm:$0xff]
    %v225 = vld [vmem:[#allocation2 + $0x190] sm:$0xff]
    %v226 = vld [vmem:[#allocation2 + $0x198] sm:$0xff]
    %v227 = vld [vmem:[#allocation2 + $0x1a0] sm:$0xff]
    %v228 = vld [vmem:[#allocation2 + $0x1a8] sm:$0xff]
    %v229 = vld [vmem:[#allocation2 + $0x1b0] sm:$0xff]
    %v230 = vld [vmem:[#allocation2 + $0x1b8] sm:$0xff]
    %v231 = vld [vmem:[#allocation2 + $0x1c0] sm:$0xff]
    %v232 = vld [vmem:[#allocation2 + $0x1c8] sm:$0xff]
    %v233 = vld [vmem:[#allocation2 + $0x1d0] sm:$0xff]
    %v234 = vld [vmem:[#allocation2 + $0x1d8] sm:$0xff]
    %v235 = vld [vmem:[#allocation2 + $0x1e0] sm:$0xff]
    %v236 = vld [vmem:[#allocation2 + $0x1e8] sm:$0xff]
    %v237 = vld [vmem:[#allocation2 + $0x1f0] sm:$0xff]
    %v238 = vld [vmem:[#allocation2 + $0x1f8] sm:$0xff]
    %v271 = vunpack.c.l.b16 %v207
    %v272 = vunpack.c.h.b16 %v207
    %v273 = vunpack.c.l.b16 %v208
    %v274 = vunpack.c.h.b16 %v208
    %v275 = vunpack.c.l.b16 %v209
    %v276 = vunpack.c.h.b16 %v209
    %v277 = vunpack.c.l.b16 %v210
    %v278 = vunpack.c.h.b16 %v210
    %v279 = vunpack.c.l.b16 %v211
    %v280 = vunpack.c.h.b16 %v211
    %v281 = vunpack.c.l.b16 %v212
    %v282 = vunpack.c.h.b16 %v212
    %v283 = vunpack.c.l.b16 %v213
    %v284 = vunpack.c.h.b16 %v213
    %v285 = vunpack.c.l.b16 %v214
    %v286 = vunpack.c.h.b16 %v214
    %v287 = vunpack.c.l.b16 %v215
    %v288 = vunpack.c.h.b16 %v215
    %v289 = vunpack.c.l.b16 %v216
    %v290 = vunpack.c.h.b16 %v216
    %v291 = vunpack.c.l.b16 %v217
    %v292 = vunpack.c.h.b16 %v217
    %v293 = vunpack.c.l.b16 %v218
    %v294 = vunpack.c.h.b16 %v218
    %v295 = vunpack.c.l.b16 %v219
    %v296 = vunpack.c.h.b16 %v219
    %v297 = vunpack.c.l.b16 %v220
    %v298 = vunpack.c.h.b16 %v220
    %v299 = vunpack.c.l.b16 %v221
    %v300 = vunpack.c.h.b16 %v221
    %v301 = vunpack.c.l.b16 %v222
    %v302 = vunpack.c.h.b16 %v222
    %v303 = vunpack.c.l.b16 %v223
    %v304 = vunpack.c.h.b16 %v223
    %v305 = vunpack.c.l.b16 %v224
    %v306 = vunpack.c.h.b16 %v224
    %v307 = vunpack.c.l.b16 %v225
    %v308 = vunpack.c.h.b16 %v225
    %v309 = vunpack.c.l.b16 %v226
    %v310 = vunpack.c.h.b16 %v226
    %v311 = vunpack.c.l.b16 %v227
    %v312 = vunpack.c.h.b16 %v227
    %v313 = vunpack.c.l.b16 %v228
    %v314 = vunpack.c.h.b16 %v228
    %v315 = vunpack.c.l.b16 %v229
    %v316 = vunpack.c.h.b16 %v229
    %v317 = vunpack.c.l.b16 %v230
    %v318 = vunpack.c.h.b16 %v230
    %v319 = vunpack.c.l.b16 %v231
    %v320 = vunpack.c.h.b16 %v231
    %v321 = vunpack.c.l.b16 %v232
    %v322 = vunpack.c.h.b16 %v232
    %v323 = vunpack.c.l.b16 %v233
    %v324 = vunpack.c.h.b16 %v233
    %v325 = vunpack.c.l.b16 %v234
    %v326 = vunpack.c.h.b16 %v234
    %v327 = vunpack.c.l.b16 %v235
    %v328 = vunpack.c.h.b16 %v235
    %v329 = vunpack.c.l.b16 %v236
    %v330 = vunpack.c.h.b16 %v236
    %v331 = vunpack.c.l.b16 %v237
    %v332 = vunpack.c.h.b16 %v237
    %v333 = vunpack.c.l.b16 %v238
    %v334 = vunpack.c.h.b16 %v238
    %v335 = vpack.c.b16 %v273, %v271
    %v336 = vpack.c.b16 %v274, %v272
    %v337 = vpack.c.b16 %v277, %v275
    %v338 = vpack.c.b16 %v278, %v276
    %v339 = vpack.c.b16 %v281, %v279
    %v340 = vpack.c.b16 %v282, %v280
    %v341 = vpack.c.b16 %v285, %v283
    %v342 = vpack.c.b16 %v286, %v284
    %v343 = vpack.c.b16 %v289, %v287
    %v344 = vpack.c.b16 %v290, %v288
    %v345 = vpack.c.b16 %v293, %v291
    %v346 = vpack.c.b16 %v294, %v292
    %v347 = vpack.c.b16 %v297, %v295
    %v348 = vpack.c.b16 %v298, %v296
    %v349 = vpack.c.b16 %v301, %v299
    %v350 = vpack.c.b16 %v302, %v300
    %v351 = vpack.c.b16 %v305, %v303
    %v352 = vpack.c.b16 %v306, %v304
    %v353 = vpack.c.b16 %v309, %v307
    %v354 = vpack.c.b16 %v310, %v308
    %v355 = vpack.c.b16 %v313, %v311
    %v356 = vpack.c.b16 %v314, %v312
    %v357 = vpack.c.b16 %v317, %v315
    %v358 = vpack.c.b16 %v318, %v316
    %v359 = vpack.c.b16 %v321, %v319
    %v360 = vpack.c.b16 %v322, %v320
    %v361 = vpack.c.b16 %v325, %v323
    %v362 = vpack.c.b16 %v326, %v324
    %v363 = vpack.c.b16 %v329, %v327
    %v364 = vpack.c.b16 %v330, %v328
    %v365 = vpack.c.b16 %v333, %v331
    %v366 = vpack.c.b16 %v334, %v332
    %399 = vmatprep.subr.bf16.mxu0 %v350
    %400 = vmatpush1.bf16.msra.mxu0 %v349
    %401 = vmatprep.subr.bf16.mxu0 %v348
    %402 = vmatpush1.bf16.msra.mxu0 %v347
    %403 = vmatprep.subr.bf16.mxu0 %v346
    %404 = vmatpush1.bf16.msra.mxu0 %v345
    %405 = vmatprep.subr.bf16.mxu0 %v344
    %406 = vmatpush1.bf16.msra.mxu0 %v343
    %407 = vmatprep.subr.bf16.mxu0 %v342
    %408 = vmatpush1.bf16.msra.mxu0 %v341
    %409 = vmatprep.subr.bf16.mxu0 %v340
    %410 = vmatpush1.bf16.msra.mxu0 %v339
    %411 = vmatprep.subr.bf16.mxu0 %v338
    %412 = vmatpush1.bf16.msra.mxu0 %v337
    %413 = vmatprep.subr.bf16.mxu0 %v336
    %414 = vmatpush1.bf16.msra.mxu0 %v335
    %415 = vmatprep.subr.bf16.mxu0 %v366
    %416 = vmatpush2.bf16.msra.mxu0 %v365
    %417 = vmatprep.subr.bf16.mxu0 %v364
    %418 = vmatpush2.bf16.msra.mxu0 %v363
    %419 = vmatprep.subr.bf16.mxu0 %v362
    %420 = vmatpush2.bf16.msra.mxu0 %v361
    %421 = vmatprep.subr.bf16.mxu0 %v360
    %422 = vmatpush2.bf16.msra.mxu0 %v359
    %423 = vmatprep.subr.bf16.mxu0 %v358
    %424 = vmatpush2.bf16.msra.mxu0 %v357
    %425 = vmatprep.subr.bf16.mxu0 %v356
    %426 = vmatpush2.bf16.msra.mxu0 %v355
    %427 = vmatprep.subr.bf16.mxu0 %v354
    %428 = vmatpush2.bf16.msra.mxu0 %v353
    %429 = vmatprep.subr.bf16.mxu0 %v352
    %430 = vmatpush2.bf16.msra.mxu0 %v351
    %431 = vmatprep.mubr.bf16.mxu0 %v204
    %432 = vmatmul.mubr.bf16.gmra.mxu0 %v203
    %v433 = vpop.f32.mrf.mxu0
    %v434 = vadd.f32 0.0, %v433
    %v435 = vpop.f32.mrf.mxu0
    %v436 = vadd.f32 0.0, %v435
    %v437 = vpop.f32.mrf.mxu0
    %v438 = vadd.f32 0.0, %v437
    %v439 = vpop.f32.mrf.mxu0
    %v440 = vadd.f32 0.0, %v439
    %441 = vmatprep.mubr.bf16.mxu0 %v206
    %442 = vmatmul.mubr.bf16.gmra.mxu0 %v205
    %v443 = vpop.f32.mrf.mxu0
    %v444 = vadd.f32 0.0, %v443
    %v445 = vpop.f32.mrf.mxu0
    %v446 = vadd.f32 0.0, %v445
    %v447 = vpop.f32.mrf.mxu0
    %v448 = vadd.f32 0.0, %v447
    %v449 = vpop.f32.mrf.mxu0
    %v450 = vadd.f32 0.0, %v449
    %451 = vdwg.mxu0
    %v484 = vunpack.c.l.b16 %v171
    %v485 = vunpack.c.h.b16 %v171
    %v486 = vunpack.c.l.b16 %v172
    %v487 = vunpack.c.h.b16 %v172
    %v488 = vunpack.c.l.b16 %v173
    %v489 = vunpack.c.h.b16 %v173
    %v490 = vunpack.c.l.b16 %v174
    %v491 = vunpack.c.h.b16 %v174
    %v492 = vunpack.c.l.b16 %v175
    %v493 = vunpack.c.h.b16 %v175
    %v494 = vunpack.c.l.b16 %v176
    %v495 = vunpack.c.h.b16 %v176
    %v496 = vunpack.c.l.b16 %v177
    %v497 = vunpack.c.h.b16 %v177
    %v498 = vunpack.c.l.b16 %v178
    %v499 = vunpack.c.h.b16 %v178
    %v500 = vunpack.c.l.b16 %v179
    %v501 = vunpack.c.h.b16 %v179
    %v502 = vunpack.c.l.b16 %v180
    %v503 = vunpack.c.h.b16 %v180
    %v504 = vunpack.c.l.b16 %v181
    %v505 = vunpack.c.h.b16 %v181
    %v506 = vunpack.c.l.b16 %v182
    %v507 = vunpack.c.h.b16 %v182
    %v508 = vunpack.c.l.b16 %v183
    %v509 = vunpack.c.h.b16 %v183
    %v510 = vunpack.c.l.b16 %v184
    %v511 = vunpack.c.h.b16 %v184
    %v512 = vunpack.c.l.b16 %v185
    %v513 = vunpack.c.h.b16 %v185
    %v514 = vunpack.c.l.b16 %v186
    %v515 = vunpack.c.h.b16 %v186
    %v516 = vunpack.c.l.b16 %v187
    %v517 = vunpack.c.h.b16 %v187
    %v518 = vunpack.c.l.b16 %v188
    %v519 = vunpack.c.h.b16 %v188
    %v520 = vunpack.c.l.b16 %v189
    %v521 = vunpack.c.h.b16 %v189
    %v522 = vunpack.c.l.b16 %v190
    %v523 = vunpack.c.h.b16 %v190
    %v524 = vunpack.c.l.b16 %v191
    %v525 = vunpack.c.h.b16 %v191
    %v526 = vunpack.c.l.b16 %v192
    %v527 = vunpack.c.h.b16 %v192
    %v528 = vunpack.c.l.b16 %v193
    %v529 = vunpack.c.h.b16 %v193
    %v530 = vunpack.c.l.b16 %v194
    %v531 = vunpack.c.h.b16 %v194
    %v532 = vunpack.c.l.b16 %v195
    %v533 = vunpack.c.h.b16 %v195
    %v534 = vunpack.c.l.b16 %v196
    %v535 = vunpack.c.h.b16 %v196
    %v536 = vunpack.c.l.b16 %v197
    %v537 = vunpack.c.h.b16 %v197
    %v538 = vunpack.c.l.b16 %v198
    %v539 = vunpack.c.h.b16 %v198
    %v540 = vunpack.c.l.b16 %v199
    %v541 = vunpack.c.h.b16 %v199
    %v542 = vunpack.c.l.b16 %v200
    %v543 = vunpack.c.h.b16 %v200
    %v544 = vunpack.c.l.b16 %v201
    %v545 = vunpack.c.h.b16 %v201
    %v546 = vunpack.c.l.b16 %v202
    %v547 = vunpack.c.h.b16 %v202
    %v548 = vpack.c.b16 %v486, %v484
    %v549 = vpack.c.b16 %v487, %v485
    %v550 = vpack.c.b16 %v490, %v488
    %v551 = vpack.c.b16 %v491, %v489
    %v552 = vpack.c.b16 %v494, %v492
    %v553 = vpack.c.b16 %v495, %v493
    %v554 = vpack.c.b16 %v498, %v496
    %v555 = vpack.c.b16 %v499, %v497
    %v556 = vpack.c.b16 %v502, %v500
    %v557 = vpack.c.b16 %v503, %v501
    %v558 = vpack.c.b16 %v506, %v504
    %v559 = vpack.c.b16 %v507, %v505
    %v560 = vpack.c.b16 %v510, %v508
    %v561 = vpack.c.b16 %v511, %v509
    %v562 = vpack.c.b16 %v514, %v512
    %v563 = vpack.c.b16 %v515, %v513
    %v564 = vpack.c.b16 %v518, %v516
    %v565 = vpack.c.b16 %v519, %v517
    %v566 = vpack.c.b16 %v522, %v520
    %v567 = vpack.c.b16 %v523, %v521
    %v568 = vpack.c.b16 %v526, %v524
    %v569 = vpack.c.b16 %v527, %v525
    %v570 = vpack.c.b16 %v530, %v528
    %v571 = vpack.c.b16 %v531, %v529
    %v572 = vpack.c.b16 %v534, %v532
    %v573 = vpack.c.b16 %v535, %v533
    %v574 = vpack.c.b16 %v538, %v536
    %v575 = vpack.c.b16 %v539, %v537
    %v576 = vpack.c.b16 %v542, %v540
    %v577 = vpack.c.b16 %v543, %v541
    %v578 = vpack.c.b16 %v546, %v544
    %v579 = vpack.c.b16 %v547, %v545
    %612 = vmatprep.subr.bf16.mxu0 %v563
    %613 = vmatpush1.bf16.msra.mxu0 %v562
    %614 = vmatprep.subr.bf16.mxu0 %v561
    %615 = vmatpush1.bf16.msra.mxu0 %v560
    %616 = vmatprep.subr.bf16.mxu0 %v559
    %617 = vmatpush1.bf16.msra.mxu0 %v558
    %618 = vmatprep.subr.bf16.mxu0 %v557
    %619 = vmatpush1.bf16.msra.mxu0 %v556
    %620 = vmatprep.subr.bf16.mxu0 %v555
    %621 = vmatpush1.bf16.msra.mxu0 %v554
    %622 = vmatprep.subr.bf16.mxu0 %v553
    %623 = vmatpush1.bf16.msra.mxu0 %v552
    %624 = vmatprep.subr.bf16.mxu0 %v551
    %625 = vmatpush1.bf16.msra.mxu0 %v550
    %626 = vmatprep.subr.bf16.mxu0 %v549
    %627 = vmatpush1.bf16.msra.mxu0 %v548
    %628 = vmatprep.subr.bf16.mxu0 %v579
    %629 = vmatpush2.bf16.msra.mxu0 %v578
    %630 = vmatprep.subr.bf16.mxu0 %v577
    %631 = vmatpush2.bf16.msra.mxu0 %v576
    %632 = vmatprep.subr.bf16.mxu0 %v575
    %633 = vmatpush2.bf16.msra.mxu0 %v574
    %634 = vmatprep.subr.bf16.mxu0 %v573
    %635 = vmatpush2.bf16.msra.mxu0 %v572
    %636 = vmatprep.subr.bf16.mxu0 %v571
    %637 = vmatpush2.bf16.msra.mxu0 %v570
    %638 = vmatprep.subr.bf16.mxu0 %v569
    %639 = vmatpush2.bf16.msra.mxu0 %v568
    %640 = vmatprep.subr.bf16.mxu0 %v567
    %641 = vmatpush2.bf16.msra.mxu0 %v566
    %642 = vmatprep.subr.bf16.mxu0 %v565
    %643 = vmatpush2.bf16.msra.mxu0 %v564
    %644 = vmatprep.mubr.bf16.mxu0 %v168
    %645 = vmatmul.mubr.bf16.gmra.mxu0 %v167
    %v646 = vpop.f32.mrf.mxu0
    %v647 = vadd.f32 %v434, %v646
    %v648 = vpop.f32.mrf.mxu0
    %v649 = vadd.f32 %v436, %v648
    %v650 = vpop.f32.mrf.mxu0
    %v651 = vadd.f32 %v438, %v650
    %v652 = vpop.f32.mrf.mxu0
    %v653 = vadd.f32 %v440, %v652
    %654 = vmatprep.mubr.bf16.mxu0 %v170
    %655 = vmatmul.mubr.bf16.gmra.mxu0 %v169
    %v656 = vpop.f32.mrf.mxu0
    %v657 = vadd.f32 %v444, %v656
    %v658 = vpop.f32.mrf.mxu0
    %v659 = vadd.f32 %v446, %v658
    %v660 = vpop.f32.mrf.mxu0
    %v661 = vadd.f32 %v448, %v660
    %v662 = vpop.f32.mrf.mxu0
    %v663 = vadd.f32 %v450, %v662
    %664 = vdwg.mxu0
    %v665 = vpack.c.bf16 %v161, %v159
    %v666 = vpack.c.bf16 %v162, %v160
    %v667 = vpack.c.bf16 %v165, %v163
    %v668 = vpack.c.bf16 %v166, %v164
    %v669 = vld [vmem:[#allocation2 + $0x200] sm:$0xff]
    %v670 = vld [vmem:[#allocation2 + $0x208] sm:$0xff]
    %v671 = vld [vmem:[#allocation2 + $0x210] sm:$0xff]
    %v672 = vld [vmem:[#allocation2 + $0x218] sm:$0xff]
    %v673 = vld [vmem:[#allocation2 + $0x220] sm:$0xff]
    %v674 = vld [vmem:[#allocation2 + $0x228] sm:$0xff]
    %v675 = vld [vmem:[#allocation2 + $0x230] sm:$0xff]
    %v676 = vld [vmem:[#allocation2 + $0x238] sm:$0xff]
    %v677 = vld [vmem:[#allocation2 + $0x240] sm:$0xff]
    %v678 = vld [vmem:[#allocation2 + $0x248] sm:$0xff]
    %v679 = vld [vmem:[#allocation2 + $0x250] sm:$0xff]
    %v680 = vld [vmem:[#allocation2 + $0x258] sm:$0xff]
    %v681 = vld [vmem:[#allocation2 + $0x260] sm:$0xff]
    %v682 = vld [vmem:[#allocation2 + $0x268] sm:$0xff]
    %v683 = vld [vmem:[#allocation2 + $0x270] sm:$0xff]
    %v684 = vld [vmem:[#allocation2 + $0x278] sm:$0xff]
    %v685 = vld [vmem:[#allocation2 + $0x280] sm:$0xff]
    %v686 = vld [vmem:[#allocation2 + $0x288] sm:$0xff]
    %v687 = vld [vmem:[#allocation2 + $0x290] sm:$0xff]
    %v688 = vld [vmem:[#allocation2 + $0x298] sm:$0xff]
    %v689 = vld [vmem:[#allocation2 + $0x2a0] sm:$0xff]
    %v690 = vld [vmem:[#allocation2 + $0x2a8] sm:$0xff]
    %v691 = vld [vmem:[#allocation2 + $0x2b0] sm:$0xff]
    %v692 = vld [vmem:[#allocation2 + $0x2b8] sm:$0xff]
    %v693 = vld [vmem:[#allocation2 + $0x2c0] sm:$0xff]
    %v694 = vld [vmem:[#allocation2 + $0x2c8] sm:$0xff]
    %v695 = vld [vmem:[#allocation2 + $0x2d0] sm:$0xff]
    %v696 = vld [vmem:[#allocation2 + $0x2d8] sm:$0xff]
    %v697 = vld [vmem:[#allocation2 + $0x2e0] sm:$0xff]
    %v698 = vld [vmem:[#allocation2 + $0x2e8] sm:$0xff]
    %v699 = vld [vmem:[#allocation2 + $0x2f0] sm:$0xff]
    %v700 = vld [vmem:[#allocation2 + $0x2f8] sm:$0xff]
    %v733 = vunpack.c.l.b16 %v669
    %v734 = vunpack.c.h.b16 %v669
    %v735 = vunpack.c.l.b16 %v670
    %v736 = vunpack.c.h.b16 %v670
    %v737 = vunpack.c.l.b16 %v671
    %v738 = vunpack.c.h.b16 %v671
    %v739 = vunpack.c.l.b16 %v672
    %v740 = vunpack.c.h.b16 %v672
    %v741 = vunpack.c.l.b16 %v673
    %v742 = vunpack.c.h.b16 %v673
    %v743 = vunpack.c.l.b16 %v674
    %v744 = vunpack.c.h.b16 %v674
    %v745 = vunpack.c.l.b16 %v675
    %v746 = vunpack.c.h.b16 %v675
    %v747 = vunpack.c.l.b16 %v676
    %v748 = vunpack.c.h.b16 %v676
    %v749 = vunpack.c.l.b16 %v677
    %v750 = vunpack.c.h.b16 %v677
    %v751 = vunpack.c.l.b16 %v678
    %v752 = vunpack.c.h.b16 %v678
    %v753 = vunpack.c.l.b16 %v679
    %v754 = vunpack.c.h.b16 %v679
    %v755 = vunpack.c.l.b16 %v680
    %v756 = vunpack.c.h.b16 %v680
    %v757 = vunpack.c.l.b16 %v681
    %v758 = vunpack.c.h.b16 %v681
    %v759 = vunpack.c.l.b16 %v682
    %v760 = vunpack.c.h.b16 %v682
    %v761 = vunpack.c.l.b16 %v683
    %v762 = vunpack.c.h.b16 %v683
    %v763 = vunpack.c.l.b16 %v684
    %v764 = vunpack.c.h.b16 %v684
    %v765 = vunpack.c.l.b16 %v685
    %v766 = vunpack.c.h.b16 %v685
    %v767 = vunpack.c.l.b16 %v686
    %v768 = vunpack.c.h.b16 %v686
    %v769 = vunpack.c.l.b16 %v687
    %v770 = vunpack.c.h.b16 %v687
    %v771 = vunpack.c.l.b16 %v688
    %v772 = vunpack.c.h.b16 %v688
    %v773 = vunpack.c.l.b16 %v689
    %v774 = vunpack.c.h.b16 %v689
    %v775 = vunpack.c.l.b16 %v690
    %v776 = vunpack.c.h.b16 %v690
    %v777 = vunpack.c.l.b16 %v691
    %v778 = vunpack.c.h.b16 %v691
    %v779 = vunpack.c.l.b16 %v692
    %v780 = vunpack.c.h.b16 %v692
    %v781 = vunpack.c.l.b16 %v693
    %v782 = vunpack.c.h.b16 %v693
    %v783 = vunpack.c.l.b16 %v694
    %v784 = vunpack.c.h.b16 %v694
    %v785 = vunpack.c.l.b16 %v695
    %v786 = vunpack.c.h.b16 %v695
    %v787 = vunpack.c.l.b16 %v696
    %v788 = vunpack.c.h.b16 %v696
    %v789 = vunpack.c.l.b16 %v697
    %v790 = vunpack.c.h.b16 %v697
    %v791 = vunpack.c.l.b16 %v698
    %v792 = vunpack.c.h.b16 %v698
    %v793 = vunpack.c.l.b16 %v699
    %v794 = vunpack.c.h.b16 %v699
    %v795 = vunpack.c.l.b16 %v700
    %v796 = vunpack.c.h.b16 %v700
    %v797 = vpack.c.b16 %v735, %v733
    %v798 = vpack.c.b16 %v736, %v734
    %v799 = vpack.c.b16 %v739, %v737
    %v800 = vpack.c.b16 %v740, %v738
    %v801 = vpack.c.b16 %v743, %v741
    %v802 = vpack.c.b16 %v744, %v742
    %v803 = vpack.c.b16 %v747, %v745
    %v804 = vpack.c.b16 %v748, %v746
    %v805 = vpack.c.b16 %v751, %v749
    %v806 = vpack.c.b16 %v752, %v750
    %v807 = vpack.c.b16 %v755, %v753
    %v808 = vpack.c.b16 %v756, %v754
    %v809 = vpack.c.b16 %v759, %v757
    %v810 = vpack.c.b16 %v760, %v758
    %v811 = vpack.c.b16 %v763, %v761
    %v812 = vpack.c.b16 %v764, %v762
    %v813 = vpack.c.b16 %v767, %v765
    %v814 = vpack.c.b16 %v768, %v766
    %v815 = vpack.c.b16 %v771, %v769
    %v816 = vpack.c.b16 %v772, %v770
    %v817 = vpack.c.b16 %v775, %v773
    %v818 = vpack.c.b16 %v776, %v774
    %v819 = vpack.c.b16 %v779, %v777
    %v820 = vpack.c.b16 %v780, %v778
    %v821 = vpack.c.b16 %v783, %v781
    %v822 = vpack.c.b16 %v784, %v782
    %v823 = vpack.c.b16 %v787, %v785
    %v824 = vpack.c.b16 %v788, %v786
    %v825 = vpack.c.b16 %v791, %v789
    %v826 = vpack.c.b16 %v792, %v790
    %v827 = vpack.c.b16 %v795, %v793
    %v828 = vpack.c.b16 %v796, %v794
    %861 = vmatprep.subr.bf16.mxu0 %v812
    %862 = vmatpush1.bf16.msra.mxu0 %v811
    %863 = vmatprep.subr.bf16.mxu0 %v810
    %864 = vmatpush1.bf16.msra.mxu0 %v809
    %865 = vmatprep.subr.bf16.mxu0 %v808
    %866 = vmatpush1.bf16.msra.mxu0 %v807
    %867 = vmatprep.subr.bf16.mxu0 %v806
    %868 = vmatpush1.bf16.msra.mxu0 %v805
    %869 = vmatprep.subr.bf16.mxu0 %v804
    %870 = vmatpush1.bf16.msra.mxu0 %v803
    %871 = vmatprep.subr.bf16.mxu0 %v802
    %872 = vmatpush1.bf16.msra.mxu0 %v801
    %873 = vmatprep.subr.bf16.mxu0 %v800
    %874 = vmatpush1.bf16.msra.mxu0 %v799
    %875 = vmatprep.subr.bf16.mxu0 %v798
    %876 = vmatpush1.bf16.msra.mxu0 %v797
    %877 = vmatprep.subr.bf16.mxu0 %v828
    %878 = vmatpush2.bf16.msra.mxu0 %v827
    %879 = vmatprep.subr.bf16.mxu0 %v826
    %880 = vmatpush2.bf16.msra.mxu0 %v825
    %881 = vmatprep.subr.bf16.mxu0 %v824
    %882 = vmatpush2.bf16.msra.mxu0 %v823
    %883 = vmatprep.subr.bf16.mxu0 %v822
    %884 = vmatpush2.bf16.msra.mxu0 %v821
    %885 = vmatprep.subr.bf16.mxu0 %v820
    %886 = vmatpush2.bf16.msra.mxu0 %v819
    %887 = vmatprep.subr.bf16.mxu0 %v818
    %888 = vmatpush2.bf16.msra.mxu0 %v817
    %889 = vmatprep.subr.bf16.mxu0 %v816
    %890 = vmatpush2.bf16.msra.mxu0 %v815
    %891 = vmatprep.subr.bf16.mxu0 %v814
    %892 = vmatpush2.bf16.msra.mxu0 %v813
    %893 = vmatprep.mubr.bf16.mxu0 %v666
    %894 = vmatmul.mubr.bf16.gmra.mxu0 %v665
    %v895 = vpop.f32.mrf.mxu0
    %v896 = vadd.f32 0.0, %v895
    %v897 = vpop.f32.mrf.mxu0
    %v898 = vadd.f32 0.0, %v897
    %v899 = vpop.f32.mrf.mxu0
    %v900 = vadd.f32 0.0, %v899
    %v901 = vpop.f32.mrf.mxu0
    %v902 = vadd.f32 0.0, %v901
    %903 = vmatprep.mubr.bf16.mxu0 %v668
    %904 = vmatmul.mubr.bf16.gmra.mxu0 %v667
    %v905 = vpop.f32.mrf.mxu0
    %v906 = vadd.f32 0.0, %v905
    %v907 = vpop.f32.mrf.mxu0
    %v908 = vadd.f32 0.0, %v907
    %v909 = vpop.f32.mrf.mxu0
    %v910 = vadd.f32 0.0, %v909
    %v911 = vpop.f32.mrf.mxu0
    %v912 = vadd.f32 0.0, %v911
    %913 = vdwg.mxu0
    %v914 = vadd.f32 %v647, %v896
    %v915 = vadd.f32 %v649, %v898
    %v916 = vadd.f32 %v651, %v900
    %v917 = vadd.f32 %v653, %v902
    %v918 = vadd.f32 %v657, %v906
    %v919 = vadd.f32 %v659, %v908
    %v920 = vadd.f32 %v661, %v910
    %v921 = vadd.f32 %v663, %v912
    %v922 = vld [vmem:[%s2] sm:$0x3]
    %v924 = vlaneseq
    %v925 = vshrl.u32 %v924, 7
    %v926 = vsub.s32 0, %v925
    %v927 = vrot.slane %v922, %v926
    %v928 = vlaneseq
    %v929 = vshrl.u32 %v928, 7
    %v930 = vsub.s32 1, %v929
    %v931 = vrot.slane %v922, %v930
    %v934 = vadd.f32 %v914, %v927
    %v935 = vadd.f32 %v915, %v931
    %v936 = vadd.f32 %v916, %v927
    %v937 = vadd.f32 %v917, %v931
    %v938 = vadd.f32 %v918, %v927
    %v939 = vadd.f32 %v919, %v931
    %v940 = vadd.f32 %v920, %v927
    %v941 = vadd.f32 %v921, %v931
    %v942 = vmax.f32 %v934, 0.0
    %v943 = vmax.f32 %v935, 0.0
    %v944 = vmax.f32 %v936, 0.0
    %v945 = vmax.f32 %v937, 0.0
    %v946 = vmax.f32 %v938, 0.0
    %v947 = vmax.f32 %v939, 0.0
    %v948 = vmax.f32 %v940, 0.0
    %v949 = vmax.f32 %v941, 0.0
    %v950 = vrot.slane %v942, 7
    %v951 = vrot.slane %v943, 7
    %v952 = vrot.slane %v944, 7
    %v953 = vrot.slane %v945, 7
    %v954 = vrot.slane %v946, 7
    %v955 = vrot.slane %v947, 7
    %v956 = vrot.slane %v948, 7
    %v957 = vrot.slane %v949, 7
    %v958 = vsel %vm125, %v954, %v956
    %v959 = vsel %vm125, %v955, %v957
    %v960 = vsel %vm125, %v952, %v954
    %v961 = vsel %vm125, %v953, %v955
    %v962 = vsel %vm125, %v950, %v952
    %v963 = vsel %vm125, %v951, %v953
    %v964 = vsel %vm125, %v956, %v950
    %v965 = vsel %vm125, %v957, %v951
    %v966 = vsel %vm101, 0.0, %v964
    %v967 = vsel %vm101, 0.0, %v965
    %v968 = vsel %vm102, 0.0, %v962
    %v969 = vsel %vm102, 0.0, %v963
    %v970 = vsel %vm103, 0.0, %v960
    %v971 = vsel %vm103, 0.0, %v961
    %v972 = vsel %vm104, 0.0, %v958
    %v973 = vsel %vm104, 0.0, %v959
    %v974 = vrot.slane %v942, 1
    %v975 = vrot.slane %v943, 1
    %v976 = vrot.slane %v944, 1
    %v977 = vrot.slane %v945, 1
    %v978 = vrot.slane %v946, 1
    %v979 = vrot.slane %v947, 1
    %v980 = vrot.slane %v948, 1
    %v981 = vrot.slane %v949, 1
    %v982 = vsel %vm150, %v978, %v980
    %v983 = vsel %vm150, %v979, %v981
    %v984 = vsel %vm150, %v976, %v978
    %v985 = vsel %vm150, %v977, %v979
    %v986 = vsel %vm150, %v974, %v976
    %v987 = vsel %vm150, %v975, %v977
    %v988 = vsel %vm150, %v980, %v974
    %v989 = vsel %vm150, %v981, %v975
    %v990 = vsel %vm105, 0.0, %v986
    %v991 = vsel %vm105, 0.0, %v987
    %v992 = vsel %vm106, 0.0, %v984
    %v993 = vsel %vm106, 0.0, %v985
    %v994 = vsel %vm107, 0.0, %v982
    %v995 = vsel %vm107, 0.0, %v983
    %v996 = vsel %vm108, 0.0, %v988
    %v997 = vsel %vm108, 0.0, %v989
    %v998 = vpack.c.bf16 %v968, %v966
    %v999 = vpack.c.bf16 %v969, %v967
    %v1000 = vpack.c.bf16 %v972, %v970
    %v1001 = vpack.c.bf16 %v973, %v971
    %v1002 = vld [vmem:[#allocation4] sm:$0xff]
    %v1003 = vld [vmem:[#allocation4 + $0x8] sm:$0xff]
    %v1004 = vld [vmem:[#allocation4 + $0x10] sm:$0xff]
    %v1005 = vld [vmem:[#allocation4 + $0x18] sm:$0xff]
    %v1006 = vld [vmem:[#allocation4 + $0x20] sm:$0xff]
    %v1007 = vld [vmem:[#allocation4 + $0x28] sm:$0xff]
    %v1008 = vld [vmem:[#allocation4 + $0x30] sm:$0xff]
    %v1009 = vld [vmem:[#allocation4 + $0x38] sm:$0xff]
    %v1010 = vld [vmem:[#allocation4 + $0x40] sm:$0xff]
    %v1011 = vld [vmem:[#allocation4 + $0x48] sm:$0xff]
    %v1012 = vld [vmem:[#allocation4 + $0x50] sm:$0xff]
    %v1013 = vld [vmem:[#allocation4 + $0x58] sm:$0xff]
    %v1014 = vld [vmem:[#allocation4 + $0x60] sm:$0xff]
    %v1015 = vld [vmem:[#allocation4 + $0x68] sm:$0xff]
    %v1016 = vld [vmem:[#allocation4 + $0x70] sm:$0xff]
    %v1017 = vld [vmem:[#allocation4 + $0x78] sm:$0xff]
    %v1018 = vld [vmem:[#allocation4 + $0x80] sm:$0xff]
    %v1019 = vld [vmem:[#allocation4 + $0x88] sm:$0xff]
    %v1020 = vld [vmem:[#allocation4 + $0x90] sm:$0xff]
    %v1021 = vld [vmem:[#allocation4 + $0x98] sm:$0xff]
    %v1022 = vld [vmem:[#allocation4 + $0xa0] sm:$0xff]
    %v1023 = vld [vmem:[#allocation4 + $0xa8] sm:$0xff]
    %v1024 = vld [vmem:[#allocation4 + $0xb0] sm:$0xff]
    %v1025 = vld [vmem:[#allocation4 + $0xb8] sm:$0xff]
    %v1026 = vld [vmem:[#allocation4 + $0xc0] sm:$0xff]
    %v1027 = vld [vmem:[#allocation4 + $0xc8] sm:$0xff]
    %v1028 = vld [vmem:[#allocation4 + $0xd0] sm:$0xff]
    %v1029 = vld [vmem:[#allocation4 + $0xd8] sm:$0xff]
    %v1030 = vld [vmem:[#allocation4 + $0xe0] sm:$0xff]
    %v1031 = vld [vmem:[#allocation4 + $0xe8] sm:$0xff]
    %v1032 = vld [vmem:[#allocation4 + $0xf0] sm:$0xff]
    %v1033 = vld [vmem:[#allocation4 + $0xf8] sm:$0xff]
    %v1034 = vpack.c.bf16 %v944, %v942
    %v1035 = vpack.c.bf16 %v945, %v943
    %v1036 = vpack.c.bf16 %v948, %v946
    %v1037 = vpack.c.bf16 %v949, %v947
    %v1038 = vld [vmem:[#allocation4 + $0x100] sm:$0xff]
    %v1039 = vld [vmem:[#allocation4 + $0x108] sm:$0xff]
    %v1040 = vld [vmem:[#allocation4 + $0x110] sm:$0xff]
    %v1041 = vld [vmem:[#allocation4 + $0x118] sm:$0xff]
    %v1042 = vld [vmem:[#allocation4 + $0x120] sm:$0xff]
    %v1043 = vld [vmem:[#allocation4 + $0x128] sm:$0xff]
    %v1044 = vld [vmem:[#allocation4 + $0x130] sm:$0xff]
    %v1045 = vld [vmem:[#allocation4 + $0x138] sm:$0xff]
    %v1046 = vld [vmem:[#allocation4 + $0x140] sm:$0xff]
    %v1047 = vld [vmem:[#allocation4 + $0x148] sm:$0xff]
    %v1048 = vld [vmem:[#allocation4 + $0x150] sm:$0xff]
    %v1049 = vld [vmem:[#allocation4 + $0x158] sm:$0xff]
    %v1050 = vld [vmem:[#allocation4 + $0x160] sm:$0xff]
    %v1051 = vld [vmem:[#allocation4 + $0x168] sm:$0xff]
    %v1052 = vld [vmem:[#allocation4 + $0x170] sm:$0xff]
    %v1053 = vld [vmem:[#allocation4 + $0x178] sm:$0xff]
    %v1054 = vld [vmem:[#allocation4 + $0x180] sm:$0xff]
    %v1055 = vld [vmem:[#allocation4 + $0x188] sm:$0xff]
    %v1056 = vld [vmem:[#allocation4 + $0x190] sm:$0xff]
    %v1057 = vld [vmem:[#allocation4 + $0x198] sm:$0xff]
    %v1058 = vld [vmem:[#allocation4 + $0x1a0] sm:$0xff]
    %v1059 = vld [vmem:[#allocation4 + $0x1a8] sm:$0xff]
    %v1060 = vld [vmem:[#allocation4 + $0x1b0] sm:$0xff]
    %v1061 = vld [vmem:[#allocation4 + $0x1b8] sm:$0xff]
    %v1062 = vld [vmem:[#allocation4 + $0x1c0] sm:$0xff]
    %v1063 = vld [vmem:[#allocation4 + $0x1c8] sm:$0xff]
    %v1064 = vld [vmem:[#allocation4 + $0x1d0] sm:$0xff]
    %v1065 = vld [vmem:[#allocation4 + $0x1d8] sm:$0xff]
    %v1066 = vld [vmem:[#allocation4 + $0x1e0] sm:$0xff]
    %v1067 = vld [vmem:[#allocation4 + $0x1e8] sm:$0xff]
    %v1068 = vld [vmem:[#allocation4 + $0x1f0] sm:$0xff]
    %v1069 = vld [vmem:[#allocation4 + $0x1f8] sm:$0xff]
    %v1102 = vunpack.c.l.b16 %v1038
    %v1103 = vunpack.c.h.b16 %v1038
    %v1104 = vunpack.c.l.b16 %v1039
    %v1105 = vunpack.c.h.b16 %v1039
    %v1106 = vunpack.c.l.b16 %v1040
    %v1107 = vunpack.c.h.b16 %v1040
    %v1108 = vunpack.c.l.b16 %v1041
    %v1109 = vunpack.c.h.b16 %v1041
    %v1110 = vunpack.c.l.b16 %v1042
    %v1111 = vunpack.c.h.b16 %v1042
    %v1112 = vunpack.c.l.b16 %v1043
    %v1113 = vunpack.c.h.b16 %v1043
    %v1114 = vunpack.c.l.b16 %v1044
    %v1115 = vunpack.c.h.b16 %v1044
    %v1116 = vunpack.c.l.b16 %v1045
    %v1117 = vunpack.c.h.b16 %v1045
    %v1118 = vunpack.c.l.b16 %v1046
    %v1119 = vunpack.c.h.b16 %v1046
    %v1120 = vunpack.c.l.b16 %v1047
    %v1121 = vunpack.c.h.b16 %v1047
    %v1122 = vunpack.c.l.b16 %v1048
    %v1123 = vunpack.c.h.b16 %v1048
    %v1124 = vunpack.c.l.b16 %v1049
    %v1125 = vunpack.c.h.b16 %v1049
    %v1126 = vunpack.c.l.b16 %v1050
    %v1127 = vunpack.c.h.b16 %v1050
    %v1128 = vunpack.c.l.b16 %v1051
    %v1129 = vunpack.c.h.b16 %v1051
    %v1130 = vunpack.c.l.b16 %v1052
    %v1131 = vunpack.c.h.b16 %v1052
    %v1132 = vunpack.c.l.b16 %v1053
    %v1133 = vunpack.c.h.b16 %v1053
    %v1134 = vunpack.c.l.b16 %v1054
    %v1135 = vunpack.c.h.b16 %v1054
    %v1136 = vunpack.c.l.b16 %v1055
    %v1137 = vunpack.c.h.b16 %v1055
    %v1138 = vunpack.c.l.b16 %v1056
    %v1139 = vunpack.c.h.b16 %v1056
    %v1140 = vunpack.c.l.b16 %v1057
    %v1141 = vunpack.c.h.b16 %v1057
    %v1142 = vunpack.c.l.b16 %v1058
    %v1143 = vunpack.c.h.b16 %v1058
    %v1144 = vunpack.c.l.b16 %v1059
    %v1145 = vunpack.c.h.b16 %v1059
    %v1146 = vunpack.c.l.b16 %v1060
    %v1147 = vunpack.c.h.b16 %v1060
    %v1148 = vunpack.c.l.b16 %v1061
    %v1149 = vunpack.c.h.b16 %v1061
    %v1150 = vunpack.c.l.b16 %v1062
    %v1151 = vunpack.c.h.b16 %v1062
    %v1152 = vunpack.c.l.b16 %v1063
    %v1153 = vunpack.c.h.b16 %v1063
    %v1154 = vunpack.c.l.b16 %v1064
    %v1155 = vunpack.c.h.b16 %v1064
    %v1156 = vunpack.c.l.b16 %v1065
    %v1157 = vunpack.c.h.b16 %v1065
    %v1158 = vunpack.c.l.b16 %v1066
    %v1159 = vunpack.c.h.b16 %v1066
    %v1160 = vunpack.c.l.b16 %v1067
    %v1161 = vunpack.c.h.b16 %v1067
    %v1162 = vunpack.c.l.b16 %v1068
    %v1163 = vunpack.c.h.b16 %v1068
    %v1164 = vunpack.c.l.b16 %v1069
    %v1165 = vunpack.c.h.b16 %v1069
    %v1166 = vpack.c.b16 %v1104, %v1102
    %v1167 = vpack.c.b16 %v1105, %v1103
    %v1168 = vpack.c.b16 %v1108, %v1106
    %v1169 = vpack.c.b16 %v1109, %v1107
    %v1170 = vpack.c.b16 %v1112, %v1110
    %v1171 = vpack.c.b16 %v1113, %v1111
    %v1172 = vpack.c.b16 %v1116, %v1114
    %v1173 = vpack.c.b16 %v1117, %v1115
    %v1174 = vpack.c.b16 %v1120, %v1118
    %v1175 = vpack.c.b16 %v1121, %v1119
    %v1176 = vpack.c.b16 %v1124, %v1122
    %v1177 = vpack.c.b16 %v1125, %v1123
    %v1178 = vpack.c.b16 %v1128, %v1126
    %v1179 = vpack.c.b16 %v1129, %v1127
    %v1180 = vpack.c.b16 %v1132, %v1130
    %v1181 = vpack.c.b16 %v1133, %v1131
    %v1182 = vpack.c.b16 %v1136, %v1134
    %v1183 = vpack.c.b16 %v1137, %v1135
    %v1184 = vpack.c.b16 %v1140, %v1138
    %v1185 = vpack.c.b16 %v1141, %v1139
    %v1186 = vpack.c.b16 %v1144, %v1142
    %v1187 = vpack.c.b16 %v1145, %v1143
    %v1188 = vpack.c.b16 %v1148, %v1146
    %v1189 = vpack.c.b16 %v1149, %v1147
    %v1190 = vpack.c.b16 %v1152, %v1150
    %v1191 = vpack.c.b16 %v1153, %v1151
    %v1192 = vpack.c.b16 %v1156, %v1154
    %v1193 = vpack.c.b16 %v1157, %v1155
    %v1194 = vpack.c.b16 %v1160, %v1158
    %v1195 = vpack.c.b16 %v1161, %v1159
    %v1196 = vpack.c.b16 %v1164, %v1162
    %v1197 = vpack.c.b16 %v1165, %v1163
    %1230 = vmatprep.subr.bf16.mxu0 %v1181
    %1231 = vmatpush1.bf16.msra.mxu0 %v1180
    %1232 = vmatprep.subr.bf16.mxu0 %v1179
    %1233 = vmatpush1.bf16.msra.mxu0 %v1178
    %1234 = vmatprep.subr.bf16.mxu0 %v1177
    %1235 = vmatpush1.bf16.msra.mxu0 %v1176
    %1236 = vmatprep.subr.bf16.mxu0 %v1175
    %1237 = vmatpush1.bf16.msra.mxu0 %v1174
    %1238 = vmatprep.subr.bf16.mxu0 %v1173
    %1239 = vmatpush1.bf16.msra.mxu0 %v1172
    %1240 = vmatprep.subr.bf16.mxu0 %v1171
    %1241 = vmatpush1.bf16.msra.mxu0 %v1170
    %1242 = vmatprep.subr.bf16.mxu0 %v1169
    %1243 = vmatpush1.bf16.msra.mxu0 %v1168
    %1244 = vmatprep.subr.bf16.mxu0 %v1167
    %1245 = vmatpush1.bf16.msra.mxu0 %v1166
    %1246 = vmatprep.subr.bf16.mxu0 %v1197
    %1247 = vmatpush2.bf16.msra.mxu0 %v1196
    %1248 = vmatprep.subr.bf16.mxu0 %v1195
    %1249 = vmatpush2.bf16.msra.mxu0 %v1194
    %1250 = vmatprep.subr.bf16.mxu0 %v1193
    %1251 = vmatpush2.bf16.msra.mxu0 %v1192
    %1252 = vmatprep.subr.bf16.mxu0 %v1191
    %1253 = vmatpush2.bf16.msra.mxu0 %v1190
    %1254 = vmatprep.subr.bf16.mxu0 %v1189
    %1255 = vmatpush2.bf16.msra.mxu0 %v1188
    %1256 = vmatprep.subr.bf16.mxu0 %v1187
    %1257 = vmatpush2.bf16.msra.mxu0 %v1186
    %1258 = vmatprep.subr.bf16.mxu0 %v1185
    %1259 = vmatpush2.bf16.msra.mxu0 %v1184
    %1260 = vmatprep.subr.bf16.mxu0 %v1183
    %1261 = vmatpush2.bf16.msra.mxu0 %v1182
    %1262 = vmatprep.mubr.bf16.mxu0 %v1035
    %1263 = vmatmul.mubr.bf16.gmra.mxu0 %v1034
    %v1264 = vpop.f32.mrf.mxu0
    %v1265 = vadd.f32 0.0, %v1264
    %v1266 = vpop.f32.mrf.mxu0
    %v1267 = vadd.f32 0.0, %v1266
    %v1268 = vpop.f32.mrf.mxu0
    %v1269 = vadd.f32 0.0, %v1268
    %v1270 = vpop.f32.mrf.mxu0
    %v1271 = vadd.f32 0.0, %v1270
    %1272 = vmatprep.mubr.bf16.mxu0 %v1037
    %1273 = vmatmul.mubr.bf16.gmra.mxu0 %v1036
    %v1274 = vpop.f32.mrf.mxu0
    %v1275 = vadd.f32 0.0, %v1274
    %v1276 = vpop.f32.mrf.mxu0
    %v1277 = vadd.f32 0.0, %v1276
    %v1278 = vpop.f32.mrf.mxu0
    %v1279 = vadd.f32 0.0, %v1278
    %v1280 = vpop.f32.mrf.mxu0
    %v1281 = vadd.f32 0.0, %v1280
    %1282 = vdwg.mxu0
    %v1315 = vunpack.c.l.b16 %v1002
    %v1316 = vunpack.c.h.b16 %v1002
    %v1317 = vunpack.c.l.b16 %v1003
    %v1318 = vunpack.c.h.b16 %v1003
    %v1319 = vunpack.c.l.b16 %v1004
    %v1320 = vunpack.c.h.b16 %v1004
    %v1321 = vunpack.c.l.b16 %v1005
    %v1322 = vunpack.c.h.b16 %v1005
    %v1323 = vunpack.c.l.b16 %v1006
    %v1324 = vunpack.c.h.b16 %v1006
    %v1325 = vunpack.c.l.b16 %v1007
    %v1326 = vunpack.c.h.b16 %v1007
    %v1327 = vunpack.c.l.b16 %v1008
    %v1328 = vunpack.c.h.b16 %v1008
    %v1329 = vunpack.c.l.b16 %v1009
    %v1330 = vunpack.c.h.b16 %v1009
    %v1331 = vunpack.c.l.b16 %v1010
    %v1332 = vunpack.c.h.b16 %v1010
    %v1333 = vunpack.c.l.b16 %v1011
    %v1334 = vunpack.c.h.b16 %v1011
    %v1335 = vunpack.c.l.b16 %v1012
    %v1336 = vunpack.c.h.b16 %v1012
    %v1337 = vunpack.c.l.b16 %v1013
    %v1338 = vunpack.c.h.b16 %v1013
    %v1339 = vunpack.c.l.b16 %v1014
    %v1340 = vunpack.c.h.b16 %v1014
    %v1341 = vunpack.c.l.b16 %v1015
    %v1342 = vunpack.c.h.b16 %v1015
    %v1343 = vunpack.c.l.b16 %v1016
    %v1344 = vunpack.c.h.b16 %v1016
    %v1345 = vunpack.c.l.b16 %v1017
    %v1346 = vunpack.c.h.b16 %v1017
    %v1347 = vunpack.c.l.b16 %v1018
    %v1348 = vunpack.c.h.b16 %v1018
    %v1349 = vunpack.c.l.b16 %v1019
    %v1350 = vunpack.c.h.b16 %v1019
    %v1351 = vunpack.c.l.b16 %v1020
    %v1352 = vunpack.c.h.b16 %v1020
    %v1353 = vunpack.c.l.b16 %v1021
    %v1354 = vunpack.c.h.b16 %v1021
    %v1355 = vunpack.c.l.b16 %v1022
    %v1356 = vunpack.c.h.b16 %v1022
    %v1357 = vunpack.c.l.b16 %v1023
    %v1358 = vunpack.c.h.b16 %v1023
    %v1359 = vunpack.c.l.b16 %v1024
    %v1360 = vunpack.c.h.b16 %v1024
    %v1361 = vunpack.c.l.b16 %v1025
    %v1362 = vunpack.c.h.b16 %v1025
    %v1363 = vunpack.c.l.b16 %v1026
    %v1364 = vunpack.c.h.b16 %v1026
    %v1365 = vunpack.c.l.b16 %v1027
    %v1366 = vunpack.c.h.b16 %v1027
    %v1367 = vunpack.c.l.b16 %v1028
    %v1368 = vunpack.c.h.b16 %v1028
    %v1369 = vunpack.c.l.b16 %v1029
    %v1370 = vunpack.c.h.b16 %v1029
    %v1371 = vunpack.c.l.b16 %v1030
    %v1372 = vunpack.c.h.b16 %v1030
    %v1373 = vunpack.c.l.b16 %v1031
    %v1374 = vunpack.c.h.b16 %v1031
    %v1375 = vunpack.c.l.b16 %v1032
    %v1376 = vunpack.c.h.b16 %v1032
    %v1377 = vunpack.c.l.b16 %v1033
    %v1378 = vunpack.c.h.b16 %v1033
    %v1379 = vpack.c.b16 %v1317, %v1315
    %v1380 = vpack.c.b16 %v1318, %v1316
    %v1381 = vpack.c.b16 %v1321, %v1319
    %v1382 = vpack.c.b16 %v1322, %v1320
    %v1383 = vpack.c.b16 %v1325, %v1323
    %v1384 = vpack.c.b16 %v1326, %v1324
    %v1385 = vpack.c.b16 %v1329, %v1327
    %v1386 = vpack.c.b16 %v1330, %v1328
    %v1387 = vpack.c.b16 %v1333, %v1331
    %v1388 = vpack.c.b16 %v1334, %v1332
    %v1389 = vpack.c.b16 %v1337, %v1335
    %v1390 = vpack.c.b16 %v1338, %v1336
    %v1391 = vpack.c.b16 %v1341, %v1339
    %v1392 = vpack.c.b16 %v1342, %v1340
    %v1393 = vpack.c.b16 %v1345, %v1343
    %v1394 = vpack.c.b16 %v1346, %v1344
    %v1395 = vpack.c.b16 %v1349, %v1347
    %v1396 = vpack.c.b16 %v1350, %v1348
    %v1397 = vpack.c.b16 %v1353, %v1351
    %v1398 = vpack.c.b16 %v1354, %v1352
    %v1399 = vpack.c.b16 %v1357, %v1355
    %v1400 = vpack.c.b16 %v1358, %v1356
    %v1401 = vpack.c.b16 %v1361, %v1359
    %v1402 = vpack.c.b16 %v1362, %v1360
    %v1403 = vpack.c.b16 %v1365, %v1363
    %v1404 = vpack.c.b16 %v1366, %v1364
    %v1405 = vpack.c.b16 %v1369, %v1367
    %v1406 = vpack.c.b16 %v1370, %v1368
    %v1407 = vpack.c.b16 %v1373, %v1371
    %v1408 = vpack.c.b16 %v1374, %v1372
    %v1409 = vpack.c.b16 %v1377, %v1375
    %v1410 = vpack.c.b16 %v1378, %v1376
    %1443 = vmatprep.subr.bf16.mxu0 %v1394
    %1444 = vmatpush1.bf16.msra.mxu0 %v1393
    %1445 = vmatprep.subr.bf16.mxu0 %v1392
    %1446 = vmatpush1.bf16.msra.mxu0 %v1391
    %1447 = vmatprep.subr.bf16.mxu0 %v1390
    %1448 = vmatpush1.bf16.msra.mxu0 %v1389
    %1449 = vmatprep.subr.bf16.mxu0 %v1388
    %1450 = vmatpush1.bf16.msra.mxu0 %v1387
    %1451 = vmatprep.subr.bf16.mxu0 %v1386
    %1452 = vmatpush1.bf16.msra.mxu0 %v1385
    %1453 = vmatprep.subr.bf16.mxu0 %v1384
    %1454 = vmatpush1.bf16.msra.mxu0 %v1383
    %1455 = vmatprep.subr.bf16.mxu0 %v1382
    %1456 = vmatpush1.bf16.msra.mxu0 %v1381
    %1457 = vmatprep.subr.bf16.mxu0 %v1380
    %1458 = vmatpush1.bf16.msra.mxu0 %v1379
    %1459 = vmatprep.subr.bf16.mxu0 %v1410
    %1460 = vmatpush2.bf16.msra.mxu0 %v1409
    %1461 = vmatprep.subr.bf16.mxu0 %v1408
    %1462 = vmatpush2.bf16.msra.mxu0 %v1407
    %1463 = vmatprep.subr.bf16.mxu0 %v1406
    %1464 = vmatpush2.bf16.msra.mxu0 %v1405
    %1465 = vmatprep.subr.bf16.mxu0 %v1404
    %1466 = vmatpush2.bf16.msra.mxu0 %v1403
    %1467 = vmatprep.subr.bf16.mxu0 %v1402
    %1468 = vmatpush2.bf16.msra.mxu0 %v1401
    %1469 = vmatprep.subr.bf16.mxu0 %v1400
    %1470 = vmatpush2.bf16.msra.mxu0 %v1399
    %1471 = vmatprep.subr.bf16.mxu0 %v1398
    %1472 = vmatpush2.bf16.msra.mxu0 %v1397
    %1473 = vmatprep.subr.bf16.mxu0 %v1396
    %1474 = vmatpush2.bf16.msra.mxu0 %v1395
    %1475 = vmatprep.mubr.bf16.mxu0 %v999
    %1476 = vmatmul.mubr.bf16.gmra.mxu0 %v998
    %v1477 = vpop.f32.mrf.mxu0
    %v1478 = vadd.f32 %v1265, %v1477
    %v1479 = vpop.f32.mrf.mxu0
    %v1480 = vadd.f32 %v1267, %v1479
    %v1481 = vpop.f32.mrf.mxu0
    %v1482 = vadd.f32 %v1269, %v1481
    %v1483 = vpop.f32.mrf.mxu0
    %v1484 = vadd.f32 %v1271, %v1483
    %1485 = vmatprep.mubr.bf16.mxu0 %v1001
    %1486 = vmatmul.mubr.bf16.gmra.mxu0 %v1000
    %v1487 = vpop.f32.mrf.mxu0
    %v1488 = vadd.f32 %v1275, %v1487
    %v1489 = vpop.f32.mrf.mxu0
    %v1490 = vadd.f32 %v1277, %v1489
    %v1491 = vpop.f32.mrf.mxu0
    %v1492 = vadd.f32 %v1279, %v1491
    %v1493 = vpop.f32.mrf.mxu0
    %v1494 = vadd.f32 %v1281, %v1493
    %1495 = vdwg.mxu0
    %v1496 = vpack.c.bf16 %v992, %v990
    %v1497 = vpack.c.bf16 %v993, %v991
    %v1498 = vpack.c.bf16 %v996, %v994
    %v1499 = vpack.c.bf16 %v997, %v995
    %v1500 = vld [vmem:[#allocation4 + $0x200] sm:$0xff]
    %v1501 = vld [vmem:[#allocation4 + $0x208] sm:$0xff]
    %v1502 = vld [vmem:[#allocation4 + $0x210] sm:$0xff]
    %v1503 = vld [vmem:[#allocation4 + $0x218] sm:$0xff]
    %v1504 = vld [vmem:[#allocation4 + $0x220] sm:$0xff]
    %v1505 = vld [vmem:[#allocation4 + $0x228] sm:$0xff]
    %v1506 = vld [vmem:[#allocation4 + $0x230] sm:$0xff]
    %v1507 = vld [vmem:[#allocation4 + $0x238] sm:$0xff]
    %v1508 = vld [vmem:[#allocation4 + $0x240] sm:$0xff]
    %v1509 = vld [vmem:[#allocation4 + $0x248] sm:$0xff]
    %v1510 = vld [vmem:[#allocation4 + $0x250] sm:$0xff]
    %v1511 = vld [vmem:[#allocation4 + $0x258] sm:$0xff]
    %v1512 = vld [vmem:[#allocation4 + $0x260] sm:$0xff]
    %v1513 = vld [vmem:[#allocation4 + $0x268] sm:$0xff]
    %v1514 = vld [vmem:[#allocation4 + $0x270] sm:$0xff]
    %v1515 = vld [vmem:[#allocation4 + $0x278] sm:$0xff]
    %v1516 = vld [vmem:[#allocation4 + $0x280] sm:$0xff]
    %v1517 = vld [vmem:[#allocation4 + $0x288] sm:$0xff]
    %v1518 = vld [vmem:[#allocation4 + $0x290] sm:$0xff]
    %v1519 = vld [vmem:[#allocation4 + $0x298] sm:$0xff]
    %v1520 = vld [vmem:[#allocation4 + $0x2a0] sm:$0xff]
    %v1521 = vld [vmem:[#allocation4 + $0x2a8] sm:$0xff]
    %v1522 = vld [vmem:[#allocation4 + $0x2b0] sm:$0xff]
    %v1523 = vld [vmem:[#allocation4 + $0x2b8] sm:$0xff]
    %v1524 = vld [vmem:[#allocation4 + $0x2c0] sm:$0xff]
    %v1525 = vld [vmem:[#allocation4 + $0x2c8] sm:$0xff]
    %v1526 = vld [vmem:[#allocation4 + $0x2d0] sm:$0xff]
    %v1527 = vld [vmem:[#allocation4 + $0x2d8] sm:$0xff]
    %v1528 = vld [vmem:[#allocation4 + $0x2e0] sm:$0xff]
    %v1529 = vld [vmem:[#allocation4 + $0x2e8] sm:$0xff]
    %v1530 = vld [vmem:[#allocation4 + $0x2f0] sm:$0xff]
    %v1531 = vld [vmem:[#allocation4 + $0x2f8] sm:$0xff]
    %v1564 = vunpack.c.l.b16 %v1500
    %v1565 = vunpack.c.h.b16 %v1500
    %v1566 = vunpack.c.l.b16 %v1501
    %v1567 = vunpack.c.h.b16 %v1501
    %v1568 = vunpack.c.l.b16 %v1502
    %v1569 = vunpack.c.h.b16 %v1502
    %v1570 = vunpack.c.l.b16 %v1503
    %v1571 = vunpack.c.h.b16 %v1503
    %v1572 = vunpack.c.l.b16 %v1504
    %v1573 = vunpack.c.h.b16 %v1504
    %v1574 = vunpack.c.l.b16 %v1505
    %v1575 = vunpack.c.h.b16 %v1505
    %v1576 = vunpack.c.l.b16 %v1506
    %v1577 = vunpack.c.h.b16 %v1506
    %v1578 = vunpack.c.l.b16 %v1507
    %v1579 = vunpack.c.h.b16 %v1507
    %v1580 = vunpack.c.l.b16 %v1508
    %v1581 = vunpack.c.h.b16 %v1508
    %v1582 = vunpack.c.l.b16 %v1509
    %v1583 = vunpack.c.h.b16 %v1509
    %v1584 = vunpack.c.l.b16 %v1510
    %v1585 = vunpack.c.h.b16 %v1510
    %v1586 = vunpack.c.l.b16 %v1511
    %v1587 = vunpack.c.h.b16 %v1511
    %v1588 = vunpack.c.l.b16 %v1512
    %v1589 = vunpack.c.h.b16 %v1512
    %v1590 = vunpack.c.l.b16 %v1513
    %v1591 = vunpack.c.h.b16 %v1513
    %v1592 = vunpack.c.l.b16 %v1514
    %v1593 = vunpack.c.h.b16 %v1514
    %v1594 = vunpack.c.l.b16 %v1515
    %v1595 = vunpack.c.h.b16 %v1515
    %v1596 = vunpack.c.l.b16 %v1516
    %v1597 = vunpack.c.h.b16 %v1516
    %v1598 = vunpack.c.l.b16 %v1517
    %v1599 = vunpack.c.h.b16 %v1517
    %v1600 = vunpack.c.l.b16 %v1518
    %v1601 = vunpack.c.h.b16 %v1518
    %v1602 = vunpack.c.l.b16 %v1519
    %v1603 = vunpack.c.h.b16 %v1519
    %v1604 = vunpack.c.l.b16 %v1520
    %v1605 = vunpack.c.h.b16 %v1520
    %v1606 = vunpack.c.l.b16 %v1521
    %v1607 = vunpack.c.h.b16 %v1521
    %v1608 = vunpack.c.l.b16 %v1522
    %v1609 = vunpack.c.h.b16 %v1522
    %v1610 = vunpack.c.l.b16 %v1523
    %v1611 = vunpack.c.h.b16 %v1523
    %v1612 = vunpack.c.l.b16 %v1524
    %v1613 = vunpack.c.h.b16 %v1524
    %v1614 = vunpack.c.l.b16 %v1525
    %v1615 = vunpack.c.h.b16 %v1525
    %v1616 = vunpack.c.l.b16 %v1526
    %v1617 = vunpack.c.h.b16 %v1526
    %v1618 = vunpack.c.l.b16 %v1527
    %v1619 = vunpack.c.h.b16 %v1527
    %v1620 = vunpack.c.l.b16 %v1528
    %v1621 = vunpack.c.h.b16 %v1528
    %v1622 = vunpack.c.l.b16 %v1529
    %v1623 = vunpack.c.h.b16 %v1529
    %v1624 = vunpack.c.l.b16 %v1530
    %v1625 = vunpack.c.h.b16 %v1530
    %v1626 = vunpack.c.l.b16 %v1531
    %v1627 = vunpack.c.h.b16 %v1531
    %v1628 = vpack.c.b16 %v1566, %v1564
    %v1629 = vpack.c.b16 %v1567, %v1565
    %v1630 = vpack.c.b16 %v1570, %v1568
    %v1631 = vpack.c.b16 %v1571, %v1569
    %v1632 = vpack.c.b16 %v1574, %v1572
    %v1633 = vpack.c.b16 %v1575, %v1573
    %v1634 = vpack.c.b16 %v1578, %v1576
    %v1635 = vpack.c.b16 %v1579, %v1577
    %v1636 = vpack.c.b16 %v1582, %v1580
    %v1637 = vpack.c.b16 %v1583, %v1581
    %v1638 = vpack.c.b16 %v1586, %v1584
    %v1639 = vpack.c.b16 %v1587, %v1585
    %v1640 = vpack.c.b16 %v1590, %v1588
    %v1641 = vpack.c.b16 %v1591, %v1589
    %v1642 = vpack.c.b16 %v1594, %v1592
    %v1643 = vpack.c.b16 %v1595, %v1593
    %v1644 = vpack.c.b16 %v1598, %v1596
    %v1645 = vpack.c.b16 %v1599, %v1597
    %v1646 = vpack.c.b16 %v1602, %v1600
    %v1647 = vpack.c.b16 %v1603, %v1601
    %v1648 = vpack.c.b16 %v1606, %v1604
    %v1649 = vpack.c.b16 %v1607, %v1605
    %v1650 = vpack.c.b16 %v1610, %v1608
    %v1651 = vpack.c.b16 %v1611, %v1609
    %v1652 = vpack.c.b16 %v1614, %v1612
    %v1653 = vpack.c.b16 %v1615, %v1613
    %v1654 = vpack.c.b16 %v1618, %v1616
    %v1655 = vpack.c.b16 %v1619, %v1617
    %v1656 = vpack.c.b16 %v1622, %v1620
    %v1657 = vpack.c.b16 %v1623, %v1621
    %v1658 = vpack.c.b16 %v1626, %v1624
    %v1659 = vpack.c.b16 %v1627, %v1625
    %1692 = vmatprep.subr.bf16.mxu0 %v1643
    %1693 = vmatpush1.bf16.msra.mxu0 %v1642
    %1694 = vmatprep.subr.bf16.mxu0 %v1641
    %1695 = vmatpush1.bf16.msra.mxu0 %v1640
    %1696 = vmatprep.subr.bf16.mxu0 %v1639
    %1697 = vmatpush1.bf16.msra.mxu0 %v1638
    %1698 = vmatprep.subr.bf16.mxu0 %v1637
    %1699 = vmatpush1.bf16.msra.mxu0 %v1636
    %1700 = vmatprep.subr.bf16.mxu0 %v1635
    %1701 = vmatpush1.bf16.msra.mxu0 %v1634
    %1702 = vmatprep.subr.bf16.mxu0 %v1633
    %1703 = vmatpush1.bf16.msra.mxu0 %v1632
    %1704 = vmatprep.subr.bf16.mxu0 %v1631
    %1705 = vmatpush1.bf16.msra.mxu0 %v1630
    %1706 = vmatprep.subr.bf16.mxu0 %v1629
    %1707 = vmatpush1.bf16.msra.mxu0 %v1628
    %1708 = vmatprep.subr.bf16.mxu0 %v1659
    %1709 = vmatpush2.bf16.msra.mxu0 %v1658
    %1710 = vmatprep.subr.bf16.mxu0 %v1657
    %1711 = vmatpush2.bf16.msra.mxu0 %v1656
    %1712 = vmatprep.subr.bf16.mxu0 %v1655
    %1713 = vmatpush2.bf16.msra.mxu0 %v1654
    %1714 = vmatprep.subr.bf16.mxu0 %v1653
    %1715 = vmatpush2.bf16.msra.mxu0 %v1652
    %1716 = vmatprep.subr.bf16.mxu0 %v1651
    %1717 = vmatpush2.bf16.msra.mxu0 %v1650
    %1718 = vmatprep.subr.bf16.mxu0 %v1649
    %1719 = vmatpush2.bf16.msra.mxu0 %v1648
    %1720 = vmatprep.subr.bf16.mxu0 %v1647
    %1721 = vmatpush2.bf16.msra.mxu0 %v1646
    %1722 = vmatprep.subr.bf16.mxu0 %v1645
    %1723 = vmatpush2.bf16.msra.mxu0 %v1644
    %1724 = vmatprep.mubr.bf16.mxu0 %v1497
    %1725 = vmatmul.mubr.bf16.gmra.mxu0 %v1496
    %v1726 = vpop.f32.mrf.mxu0
    %v1727 = vadd.f32 0.0, %v1726
    %v1728 = vpop.f32.mrf.mxu0
    %v1729 = vadd.f32 0.0, %v1728
    %v1730 = vpop.f32.mrf.mxu0
    %v1731 = vadd.f32 0.0, %v1730
    %v1732 = vpop.f32.mrf.mxu0
    %v1733 = vadd.f32 0.0, %v1732
    %1734 = vmatprep.mubr.bf16.mxu0 %v1499
    %1735 = vmatmul.mubr.bf16.gmra.mxu0 %v1498
    %v1736 = vpop.f32.mrf.mxu0
    %v1737 = vadd.f32 0.0, %v1736
    %v1738 = vpop.f32.mrf.mxu0
    %v1739 = vadd.f32 0.0, %v1738
    %v1740 = vpop.f32.mrf.mxu0
    %v1741 = vadd.f32 0.0, %v1740
    %v1742 = vpop.f32.mrf.mxu0
    %v1743 = vadd.f32 0.0, %v1742
    %1744 = vdwg.mxu0
    %v1745 = vadd.f32 %v1478, %v1727
    %v1746 = vadd.f32 %v1480, %v1729
    %v1747 = vadd.f32 %v1482, %v1731
    %v1748 = vadd.f32 %v1484, %v1733
    %v1749 = vadd.f32 %v1488, %v1737
    %v1750 = vadd.f32 %v1490, %v1739
    %v1751 = vadd.f32 %v1492, %v1741
    %v1752 = vadd.f32 %v1494, %v1743
    %v1753 = vld [vmem:[%s4] sm:$0x3]
    %v1755 = vlaneseq
    %v1756 = vshrl.u32 %v1755, 7
    %v1757 = vsub.s32 0, %v1756
    %v1758 = vrot.slane %v1753, %v1757
    %v1759 = vlaneseq
    %v1760 = vshrl.u32 %v1759, 7
    %v1761 = vsub.s32 1, %v1760
    %v1762 = vrot.slane %v1753, %v1761
    %v1765 = vadd.f32 %v1745, %v1758
    %v1766 = vadd.f32 %v1746, %v1762
    %v1767 = vadd.f32 %v1747, %v1758
    %v1768 = vadd.f32 %v1748, %v1762
    %v1769 = vadd.f32 %v1749, %v1758
    %v1770 = vadd.f32 %v1750, %v1762
    %v1771 = vadd.f32 %v1751, %v1758
    %v1772 = vadd.f32 %v1752, %v1762
    %1773 = vst [vmem:[%s5] sm:$0xff] %v1765
    %1774 = vst [vmem:[%s5 + $0x8] sm:$0xff] %v1766
    %1775 = vst [vmem:[%s5 + $0x10] sm:$0xff] %v1767
    %1776 = vst [vmem:[%s5 + $0x18] sm:$0xff] %v1768
    %1777 = vst [vmem:[%s5 + $0x20] sm:$0xff] %v1769
    %1778 = vst [vmem:[%s5 + $0x28] sm:$0xff] %v1770
    %1779 = vst [vmem:[%s5 + $0x30] sm:$0xff] %v1771
    %1780 = vst [vmem:[%s5 + $0x38] sm:$0xff] %v1772
    // Predicated region
    $region30: #{lr_local_features.1} parent=1 // pred_check
      _
    $region31: #{lr_local_features.1} parent=1 // pred_check_branch
      %1782 = sbr.rel (0) target = $region33
    $region32: #{lr_local_features.1} parent=1 // pred_region
      _
    $region33: #{lr_local_features.1} parent=1 // pred_fallthru
      _
    // Predicated region
    $region34: #{lr_local_features.1} parent=1 // pred_check
      _
    $region35: #{lr_local_features.1} parent=1 // pred_check_branch
      %1784 = sbr.rel (0) target = $region37
    $region36: #{lr_local_features.1} parent=1 // pred_region
      _
    $region37: #{lr_local_features.1} parent=1 // pred_fallthru
      _
    %1785 = vsyncpa [#allocation3], 1
    %1786 = vsyncpa [#allocation5], 1

</llo_original>
